<compile_context>
chip_gen: v5e
topology: v5e:2x2
jax: 0.10.0
libtpu: 0.0.40
codegen_flags: <defaults>
</compile_context>

<pallas_src>
import numpy as np
import jax
import jax.numpy as jnp
from jax.experimental import pallas as pl
from jax.experimental.pallas import tpu as pltpu


# -------------------------- sinusoid positional table --------------------------

def sinusoid_table(n_position, d_hid):
    pos = np.arange(n_position)[:, None].astype(np.float64)
    j = np.arange(d_hid)[None, :]
    angle = pos / np.power(10000.0, 2 * (j // 2) / d_hid)
    table = np.zeros((n_position, d_hid), np.float64)
    table[:, 0::2] = np.sin(angle[:, 0::2])
    table[:, 1::2] = np.cos(angle[:, 1::2])
    return jnp.asarray(table, jnp.float32)


# ------------------------------- fused Pallas kernel ----------------------------

def _make_encoder_kernel(N, Dp, D, n_head, d_k, d_v, d_inner):
    G = 3 * n_head
    inv_d = 1.0 / D  # LayerNorm statistics over the REAL model dim (padded lanes are 0)

    def layer_norm(h, g, b):
        # one-pass mean/variance: halves the dependent cross-lane reduces
        mu = jnp.sum(h, axis=-1, keepdims=True) * inv_d
        ms = jnp.sum(h * h, axis=-1, keepdims=True) * inv_d
        var = ms - mu * mu
        # gamma/beta are zero in the padded lanes -> padded lanes of the result are 0
        return (h - mu) * jax.lax.rsqrt(var + 1e-6) * g + b

    def kernel(x0_ref, bias_ref,
               wqkv_ref, wo_ref,
               ln1g_ref, ln1b_ref,
               w1_ref, b1_ref, w2_ref, b2_ref,
               ln2g_ref, ln2b_ref,
               out_ref):
        # ---- layer 0: residual stream <- embedding + positional enc (pre-summed) ----
        @pl.when(pl.program_id(0) == 0)
        def _():
            out_ref[...] = x0_ref[...]

        x = out_ref[...]                              # [N, Dp] f32, VMEM-resident
        x_bf = x.astype(jnp.bfloat16)

        # ---- fused, head-major QKV projection: ONE batched dot_general over g=3H ----
        xg = jnp.broadcast_to(x_bf[None], (G, N, Dp))            # cheap leading-dim bcast
        qkv = jnp.einsum('gnd,gdk->gnk', xg, wqkv_ref[0],
                         preferred_element_type=jnp.float32)     # [3H, N, dk] f32

        q = qkv[0:n_head].astype(jnp.bfloat16)                   # [H, N, dk]
        k = qkv[n_head:2 * n_head].astype(jnp.bfloat16)
        v = qkv[2 * n_head:3 * n_head].astype(jnp.bfloat16)

        # ---- attention over the whole folded batch; bias kills cross-batch + pads ----
        s = jnp.einsum('hqd,hkd->hqk', q, k,
                       preferred_element_type=jnp.float32)       # [H, N, N] f32
        s = s + bias_ref[...]                                    # [N, N] bcast over h
        s = s - jnp.max(s, axis=-1, keepdims=True)
        e = jnp.exp(s)
        p = e * pl.reciprocal(jnp.sum(e, axis=-1, keepdims=True), approx=True)

        o = jnp.einsum('hqk,hkd->hqd', p.astype(jnp.bfloat16), v,
                       preferred_element_type=jnp.float32)       # [H, N, dv] f32

        # ---- output projection: batched over h, then a cheap sum over the lead dim ----
        attn = jnp.einsum('hnd,hdm->hnm', o.astype(jnp.bfloat16), wo_ref[0],
                          preferred_element_type=jnp.float32).sum(axis=0)   # [N, Dp]

        # ---- residual + LayerNorm 1 (f32) ----
        h1 = layer_norm(attn + x, ln1g_ref[0], ln1b_ref[0])

        # ---- position-wise feed forward (bf16 matmuls, f32 elementwise) ----
        ff = jnp.dot(h1.astype(jnp.bfloat16), w1_ref[0],
                     preferred_element_type=jnp.float32) + b1_ref[0]
        ff = jnp.maximum(ff, 0.0)
        ff = jnp.dot(ff.astype(jnp.bfloat16), w2_ref[0],
                     preferred_element_type=jnp.float32) + b2_ref[0]

        # ---- residual + LayerNorm 2 -> back into the resident output block ----
        out_ref[...] = layer_norm(ff + h1, ln2g_ref[0], ln2b_ref[0])

    return kernel


# ------------------------------ Pallas wrapper -----------------------------------

def encoder_forward(src_seq, src_mask, params, cfg):
    D, H = cfg["d_model"], cfg["n_head"]
    dk, dv = cfg["d_k"], cfg["d_v"]
    NL, d_inner = cfg["n_layers"], cfg["d_inner"]
    B, L = src_seq.shape
    N = B * L
    Dp = max(128, ((D + 127) // 128) * 128)          # lane-dense padded model dim
    assert dk == dv, "fused QKV stacking assumes d_k == d_v"

    # ---- glue (embedding gather, pos add, mask bias, zero padding) stays in XLA ----
    emb = params["emb"][src_seq]                      # [B, L, D]
    if cfg["scale_emb"]:
        emb = emb * (D ** 0.5)
    x0 = (emb + params["pos_table"][:L][None]).reshape(N, D)
    x0 = jnp.pad(x0, ((0, 0), (0, Dp - D))).astype(jnp.float32)     # [N, Dp]

    # additive attention bias over the FOLDED batch: 0 for (same batch, non-pad key),
    # -1e9 otherwise (pads and cross-batch pairs)
    bids = jnp.repeat(jnp.arange(B), L)
    valid = (src_mask[:, 0, :] > 0).reshape(N)
    ok = (bids[:, None] == bids[None, :]) & valid[None, :]
    bias = jnp.where(ok, 0.0, -1e9).astype(jnp.float32)             # [N, N]

    layers = params["layers"]

    def head_major(w, d):                             # [D, H*d] -> [H, Dp, d]
        w = w.reshape(D, H, d).transpose(1, 0, 2)
        return jnp.pad(w, ((0, 0), (0, Dp - D), (0, 0)))

    # fused head-major QKV weight, scale 1/sqrt(d_k) folded into the Q block
    wqkv = jnp.stack([jnp.concatenate([head_major(p["wq"] / np.sqrt(dk), dk),
                                       head_major(p["wk"], dk),
                                       head_major(p["wv"], dv)], axis=0)
                      for p in layers]).astype(jnp.bfloat16)        # [NL, 3H, Dp, dk]

    wo = jnp.stack([jnp.pad(p["wo"].reshape(H, dv, D),
                            ((0, 0), (0, 0), (0, Dp - D)))
                    for p in layers]).astype(jnp.bfloat16)          # [NL, H, dv, Dp]

    w1 = jnp.stack([jnp.pad(p["w1"], ((0, Dp - D), (0, 0)))
                    for p in layers]).astype(jnp.bfloat16)          # [NL, Dp, d_inner]
    w2 = jnp.stack([jnp.pad(p["w2"], ((0, 0), (0, Dp - D)))
                    for p in layers]).astype(jnp.bfloat16)          # [NL, d_inner, Dp]
    b1 = jnp.stack([p["b1"].reshape(1, d_inner) for p in layers])   # [NL, 1, d_inner]

    pad_vec = lambda v: jnp.pad(v, (0, Dp - D)).reshape(1, Dp)      # zero-padded lanes
    b2 = jnp.stack([pad_vec(p["b2"]) for p in layers])
    ln1g = jnp.stack([pad_vec(p["ln1g"]) for p in layers])
    ln1b = jnp.stack([pad_vec(p["ln1b"]) for p in layers])
    ln2g = jnp.stack([pad_vec(p["ln2g"]) for p in layers])
    ln2b = jnp.stack([pad_vec(p["ln2b"]) for p in layers])

    def const_spec(shape):
        return pl.BlockSpec(shape, lambda l: (0,) * len(shape))

    def per_layer_spec(arr):
        nd = arr.ndim
        return pl.BlockSpec((1,) + arr.shape[1:], lambda l: (l,) + (0,) * (nd - 1))

    kernel = _make_encoder_kernel(N, Dp, D, H, dk, dv, d_inner)

    out = pl.pallas_call(
        kernel,
        out_shape=jax.ShapeDtypeStruct((N, Dp), jnp.float32),
        grid_spec=pltpu.PrefetchScalarGridSpec(
            num_scalar_prefetch=0,
            grid=(NL,),
            in_specs=[
                const_spec((N, Dp)),          # x0 = emb + pos (padded, lane-dense)
                const_spec((N, N)),           # additive attention bias
                per_layer_spec(wqkv), per_layer_spec(wo),
                per_layer_spec(ln1g), per_layer_spec(ln1b),
                per_layer_spec(w1), per_layer_spec(b1),
                per_layer_spec(w2), per_layer_spec(b2),
                per_layer_spec(ln2g), per_layer_spec(ln2b),
            ],
            # same block index every step -> residual stream stays resident in VMEM
            out_specs=pl.BlockSpec((N, Dp), lambda l: (0, 0)),
        ),
        compiler_params=pltpu.CompilerParams(dimension_semantics=("arbitrary",)),
    )(x0, bias, wqkv, wo, ln1g, ln1b, w1, b1, w2, b2, ln2g, ln2b)

    return out[:, :D].reshape(B, L, D)


# ---------------------------- pure-JAX reference ---------------------------------

def _layer_norm_ref(x, g, b):
    mu = jnp.mean(x, axis=-1, keepdims=True)
    var = jnp.mean((x - mu) ** 2, axis=-1, keepdims=True)
    return (x - mu) / jnp.sqrt(var + 1e-6) * g + b


def encoder_reference(src_seq, src_mask, params, cfg):
    B, L = src_seq.shape
    H, dk, dv, D = cfg["n_head"], cfg["d_k"], cfg["d_v"], cfg["d_model"]
    x = params["emb"][src_seq]
    if cfg["scale_emb"]:
        x = x * (D ** 0.5)
    x = x + params["pos_table"][:L][None]
    for p in params["layers"]:
        q = (x @ p["wq"]).reshape(B, L, H, dk).transpose(0, 2, 1, 3)
        k = (x @ p["wk"]).reshape(B, L, H, dk).transpose(0, 2, 1, 3)
        v = (x @ p["wv"]).reshape(B, L, H, dv).transpose(0, 2, 1, 3)
        s = jnp.einsum("bhqd,bhkd->bhqk", q, k) / (dk ** 0.5)
        s = jnp.where(src_mask[:, :, None, :] > 0, s, -1e9)
        a = jax.nn.softmax(s, axis=-1)
        o = jnp.einsum("bhqk,bhkd->bhqd", a, v).transpose(0, 2, 1, 3).reshape(B, L, H * dv)
        o = o @ p["wo"]
        x1 = _layer_norm_ref(o + x, p["ln1g"], p["ln1b"])
        ff = jax.nn.relu(x1 @ p["w1"] + p["b1"]) @ p["w2"] + p["b2"]
        x = _layer_norm_ref(ff + x1, p["ln2g"], p["ln2b"])
    return x


# ------------------------------- init / main -------------------------------------

def init_params(key, cfg):
    D, H, dk, dv = cfg["d_model"], cfg["n_head"], cfg["d_k"], cfg["d_v"]
    d_inner = cfg["d_inner"]
    keys = jax.random.split(key, 1 + cfg["n_layers"])
    emb = jax.random.normal(keys[0], (cfg["n_src_vocab"], cfg["d_word_vec"]), jnp.float32) * 0.1
    emb = emb.at[cfg["pad_idx"]].set(0.0)             # padding_idx row is zero
    layers = []
    for i in range(cfg["n_layers"]):
        lk = jax.random.split(keys[1 + i], 10)
        layers.append(dict(
            wq=jax.random.normal(lk[0], (D, H * dk), jnp.float32) / np.sqrt(D),
            wk=jax.random.normal(lk[1], (D, H * dk), jnp.float32) / np.sqrt(D),
            wv=jax.random.normal(lk[2], (D, H * dv), jnp.float32) / np.sqrt(D),
            wo=jax.random.normal(lk[3], (H * dv, D), jnp.float32) / np.sqrt(H * dv),
            ln1g=1.0 + 0.05 * jax.random.normal(lk[4], (D,), jnp.float32),
            ln1b=0.05 * jax.random.normal(lk[5], (D,), jnp.float32),
            w1=jax.random.normal(lk[6], (D, d_inner), jnp.float32) / np.sqrt(D),
            b1=0.05 * jax.random.normal(lk[7], (d_inner,), jnp.float32),
            w2=jax.random.normal(lk[8], (d_inner, D), jnp.float32) / np.sqrt(d_inner),
            b2=0.05 * jax.random.normal(lk[9], (D,), jnp.float32),
            ln2g=jnp.ones((D,), jnp.float32),
            ln2b=jnp.zeros((D,), jnp.float32),
        ))
    return dict(emb=emb,
                pos_table=sinusoid_table(cfg["n_position"], cfg["d_word_vec"]),
                layers=layers)


if __name__ == "__main__":
    cfg = dict(n_src_vocab=50, d_word_vec=32, n_layers=2, n_head=4,
               d_k=8, d_v=8, d_model=32, d_inner=64, pad_idx=0,
               n_position=200, scale_emb=False)

    root = jax.random.PRNGKey(0)
    k_params, k_seq = jax.random.split(root)

    params = init_params(k_params, cfg)

    B, L = 2, 8
    src_seq = jax.random.randint(k_seq, (B, L), 1, cfg["n_src_vocab"], dtype=jnp.int32)
    src_seq = src_seq.at[1, -2:].set(cfg["pad_idx"])                          # some padding
    src_mask = (src_seq != cfg["pad_idx"]).astype(jnp.float32)[:, None, :]    # [B, 1, L]

    out = encoder_forward(src_seq, src_mask, params, cfg)
    out = jax.block_until_ready(out)

    ref = jax.block_until_ready(encoder_reference(src_seq, src_mask, params, cfg))
    np.testing.assert_allclose(np.asarray(out), np.asarray(ref), atol=5e-2, rtol=5e-2)

    print("KERNEL_OK")
</pallas_src>

<mosaic_0001>
module attributes {stable_mosaic.version = 11 : i64} {
  func.func @kernel(%arg0: i32, %arg1: memref<16x128xf32, #tpu.memory_space<vmem>>, %arg2: memref<16x16xf32, #tpu.memory_space<vmem>>, %arg3: memref<1x12x128x8xbf16, #tpu.memory_space<vmem>>, %arg4: memref<1x4x8x128xbf16, #tpu.memory_space<vmem>>, %arg5: memref<1x1x128xf32, #tpu.memory_space<vmem>>, %arg6: memref<1x1x128xf32, #tpu.memory_space<vmem>>, %arg7: memref<1x128x64xbf16, #tpu.memory_space<vmem>>, %arg8: memref<1x1x64xf32, #tpu.memory_space<vmem>>, %arg9: memref<1x64x128xbf16, #tpu.memory_space<vmem>>, %arg10: memref<1x1x128xf32, #tpu.memory_space<vmem>>, %arg11: memref<1x1x128xf32, #tpu.memory_space<vmem>>, %arg12: memref<1x1x128xf32, #tpu.memory_space<vmem>>, %arg13: memref<16x128xf32, #tpu.memory_space<vmem>>) attributes {dimension_semantics = [#tpu.dimension_semantics<arbitrary>], iteration_bounds = array<i64: 2>, scalar_prefetch = 0 : i64, scratch_operands = 0 : i64, tpu.core_type = #tpu.core_type<tc>, window_params = [{pipeline_mode = #tpu.pipeline_mode<synchronous>, transform_indices = @transform_0, window_bounds = array<i64: 16, 128>}, {pipeline_mode = #tpu.pipeline_mode<synchronous>, transform_indices = @transform_1, window_bounds = array<i64: 16, 16>}, {transform_indices = @transform_2, window_bounds = array<i64: 1, 12, 128, 8>}, {transform_indices = @transform_3, window_bounds = array<i64: 1, 4, 8, 128>}, {transform_indices = @transform_4, window_bounds = array<i64: 1, 1, 128>}, {transform_indices = @transform_5, window_bounds = array<i64: 1, 1, 128>}, {transform_indices = @transform_6, window_bounds = array<i64: 1, 128, 64>}, {transform_indices = @transform_7, window_bounds = array<i64: 1, 1, 64>}, {transform_indices = @transform_8, window_bounds = array<i64: 1, 64, 128>}, {transform_indices = @transform_9, window_bounds = array<i64: 1, 1, 128>}, {transform_indices = @transform_10, window_bounds = array<i64: 1, 1, 128>}, {transform_indices = @transform_11, window_bounds = array<i64: 1, 1, 128>}, {pipeline_mode = #tpu.pipeline_mode<synchronous>, transform_indices = @transform_12, window_bounds = array<i64: 16, 128>}]} {
    %c0_i32 = arith.constant 0 : i32
    %0 = arith.cmpi eq, %arg0, %c0_i32 : i32
    %1 = arith.extui %0 : i1 to i32
    %c0_i32_0 = arith.constant 0 : i32
    %2 = arith.cmpi ne, %1, %c0_i32_0 : i32
    scf.if %2 {
      %c0_57 = arith.constant 0 : index
      %c0_58 = arith.constant 0 : index
      %112 = vector.load %arg1[%c0_57, %c0_58] : memref<16x128xf32, #tpu.memory_space<vmem>>, vector<16x128xf32>
      %c0_59 = arith.constant 0 : index
      %c0_60 = arith.constant 0 : index
      %113 = vector.load %arg13[%c0_59, %c0_60] : memref<16x128xf32, #tpu.memory_space<vmem>>, vector<16x128xf32>
      tpu.vector_store %arg13[%c0_59, %c0_60], %112 {strides = array<i32>} : memref<16x128xf32, #tpu.memory_space<vmem>>, vector<16x128xf32>,
    } else {
    }
    %c0 = arith.constant 0 : index
    %c0_1 = arith.constant 0 : index
    %3 = vector.load %arg13[%c0, %c0_1] : memref<16x128xf32, #tpu.memory_space<vmem>>, vector<16x128xf32>
    %4 = arith.truncf %3 : vector<16x128xf32> to vector<16x128xbf16>
    %5 = vector.shape_cast %4 : vector<16x128xbf16> to vector<1x16x128xbf16>
    %6 = vector.shape_cast %5 : vector<1x16x128xbf16> to vector<1x16x128xbf16>
    %7 = vector.broadcast %6 : vector<1x16x128xbf16> to vector<12x16x128xbf16>
    %c0_2 = arith.constant 0 : index
    %c0_3 = arith.constant 0 : index
    %c0_4 = arith.constant 0 : index
    %c0_5 = arith.constant 0 : index
    %8 = vector.load %arg3[%c0_2, %c0_3, %c0_4, %c0_5] : memref<1x12x128x8xbf16, #tpu.memory_space<vmem>>, vector<1x12x128x8xbf16>
    %9 = vector.shape_cast %8 : vector<1x12x128x8xbf16> to vector<12x128x8xbf16>
    "tpu.trace_start"() <{level = 10 : i32, message = "gnd,gdk->gnk"}> : () -> ()
    %cst = arith.constant dense<0.000000e+00> : vector<12x16x8xf32>
    %10 = tpu.matmul %7, %9, %cst {dimension_numbers = #tpu.dot_dimension_numbers<[2], [1], [1], [2], [0, 0, 0, 1, 1, 2], [0], [0]>} : vector<12x16x128xbf16>, vector<12x128x8xbf16>, vector<12x16x8xf32> -> vector<12x16x8xf32>
    "tpu.trace_stop"() : () -> ()
    %11 = vector.extract_strided_slice %10 {offsets = [0, 0, 0], sizes = [4, 16, 8], strides = [1, 1, 1]} : vector<12x16x8xf32> to vector<4x16x8xf32>
    %12 = arith.truncf %11 : vector<4x16x8xf32> to vector<4x16x8xbf16>
    %13 = vector.extract_strided_slice %10 {offsets = [4, 0, 0], sizes = [4, 16, 8], strides = [1, 1, 1]} : vector<12x16x8xf32> to vector<4x16x8xf32>
    %14 = arith.truncf %13 : vector<4x16x8xf32> to vector<4x16x8xbf16>
    %15 = vector.extract_strided_slice %10 {offsets = [8, 0, 0], sizes = [4, 16, 8], strides = [1, 1, 1]} : vector<12x16x8xf32> to vector<4x16x8xf32>
    %16 = arith.truncf %15 : vector<4x16x8xf32> to vector<4x16x8xbf16>
    "tpu.trace_start"() <{level = 10 : i32, message = "hqd,hkd->hqk"}> : () -> ()
    %cst_6 = arith.constant dense<0.000000e+00> : vector<4x16x16xf32>
    %17 = tpu.matmul %12, %14, %cst_6 {dimension_numbers = #tpu.dot_dimension_numbers<[2], [2], [1], [1], [0, 0, 0, 1, 1, 1], [0], [0]>} : vector<4x16x8xbf16>, vector<4x16x8xbf16>, vector<4x16x16xf32> -> vector<4x16x16xf32>
    "tpu.trace_stop"() : () -> ()
    %c0_7 = arith.constant 0 : index
    %c0_8 = arith.constant 0 : index
    %18 = vector.load %arg2[%c0_7, %c0_8] : memref<16x16xf32, #tpu.memory_space<vmem>>, vector<16x16xf32>
    %19 = vector.shape_cast %18 : vector<16x16xf32> to vector<1x16x16xf32>
    %20 = vector.broadcast %19 : vector<1x16x16xf32> to vector<4x16x16xf32>
    %21 = arith.addf %17, %20 : vector<4x16x16xf32>
    %cst_9 = arith.constant dense<0xFF800000> : vector<4x16xf32>
    %22 = vector.multi_reduction <maximumf>, %21, %cst_9 [2] : vector<4x16x16xf32> to vector<4x16xf32>
    %23 = vector.shape_cast %22 : vector<4x16xf32> to vector<4x16x1xf32>
    %24 = vector.broadcast %23 : vector<4x16x1xf32> to vector<4x16x16xf32>
    %25 = arith.subf %21, %24 : vector<4x16x16xf32>
    %26 = math.exp %25 : vector<4x16x16xf32>
    %cst_10 = arith.constant dense<0.000000e+00> : vector<4x16xf32>
    %27 = vector.multi_reduction <add>, %26, %cst_10 [2] : vector<4x16x16xf32> to vector<4x16xf32>
    %28 = vector.shape_cast %27 : vector<4x16xf32> to vector<4x16x1xf32>
    %29 = tpu.reciprocal %28 {approx = true} : vector<4x16x1xf32> -> vector<4x16x1xf32>
    %30 = vector.broadcast %29 : vector<4x16x1xf32> to vector<4x16x16xf32>
    %31 = arith.mulf %26, %30 : vector<4x16x16xf32>
    %32 = arith.truncf %31 : vector<4x16x16xf32> to vector<4x16x16xbf16>
    "tpu.trace_start"() <{level = 10 : i32, message = "hqk,hkd->hqd"}> : () -> ()
    %cst_11 = arith.constant dense<0.000000e+00> : vector<4x16x8xf32>
    %33 = tpu.matmul %32, %16, %cst_11 {dimension_numbers = #tpu.dot_dimension_numbers<[2], [1], [1], [2], [0, 0, 0, 1, 1, 2], [0], [0]>} : vector<4x16x16xbf16>, vector<4x16x8xbf16>, vector<4x16x8xf32> -> vector<4x16x8xf32>
    "tpu.trace_stop"() : () -> ()
    %34 = arith.truncf %33 : vector<4x16x8xf32> to vector<4x16x8xbf16>
    %c0_12 = arith.constant 0 : index
    %c0_13 = arith.constant 0 : index
    %c0_14 = arith.constant 0 : index
    %c0_15 = arith.constant 0 : index
    %35 = vector.load %arg4[%c0_12, %c0_13, %c0_14, %c0_15] : memref<1x4x8x128xbf16, #tpu.memory_space<vmem>>, vector<1x4x8x128xbf16>
    %36 = vector.shape_cast %35 : vector<1x4x8x128xbf16> to vector<4x8x128xbf16>
    "tpu.trace_start"() <{level = 10 : i32, message = "hnd,hdm->hnm"}> : () -> ()
    %cst_16 = arith.constant dense<0.000000e+00> : vector<4x16x128xf32>
    %37 = tpu.matmul %34, %36, %cst_16 {dimension_numbers = #tpu.dot_dimension_numbers<[2], [1], [1], [2], [0, 0, 0, 1, 1, 2], [0], [0]>} : vector<4x16x8xbf16>, vector<4x8x128xbf16>, vector<4x16x128xf32> -> vector<4x16x128xf32>
    "tpu.trace_stop"() : () -> ()
    %cst_17 = arith.constant dense<0.000000e+00> : vector<16x128xf32>
    %38 = vector.multi_reduction <add>, %37, %cst_17 [0] : vector<4x16x128xf32> to vector<16x128xf32>
    %39 = arith.addf %38, %3 : vector<16x128xf32>
    %c0_18 = arith.constant 0 : index
    %c0_19 = arith.constant 0 : index
    %c0_20 = arith.constant 0 : index
    %40 = vector.load %arg5[%c0_18, %c0_19, %c0_20] : memref<1x1x128xf32, #tpu.memory_space<vmem>>, vector<1x1x128xf32>
    %41 = vector.shape_cast %40 : vector<1x1x128xf32> to vector<1x128xf32>
    %c0_21 = arith.constant 0 : index
    %c0_22 = arith.constant 0 : index
    %c0_23 = arith.constant 0 : index
    %42 = vector.load %arg6[%c0_21, %c0_22, %c0_23] : memref<1x1x128xf32, #tpu.memory_space<vmem>>, vector<1x1x128xf32>
    %43 = vector.shape_cast %42 : vector<1x1x128xf32> to vector<1x128xf32>
    %cst_24 = arith.constant dense<0.000000e+00> : vector<16xf32>
    %44 = vector.multi_reduction <add>, %39, %cst_24 [1] : vector<16x128xf32> to vector<16xf32>
    %45 = vector.shape_cast %44 : vector<16xf32> to vector<16x1xf32>
    %cst_25 = arith.constant 3.125000e-02 : f32
    %46 = vector.broadcast %cst_25 : f32 to vector<16x1xf32>
    %47 = arith.mulf %45, %46 : vector<16x1xf32>
    %48 = arith.mulf %39, %39 : vector<16x128xf32>
    %cst_26 = arith.constant dense<0.000000e+00> : vector<16xf32>
    %49 = vector.multi_reduction <add>, %48, %cst_26 [1] : vector<16x128xf32> to vector<16xf32>
    %50 = vector.shape_cast %49 : vector<16xf32> to vector<16x1xf32>
    %cst_27 = arith.constant 3.125000e-02 : f32
    %51 = vector.broadcast %cst_27 : f32 to vector<16x1xf32>
    %52 = arith.mulf %50, %51 : vector<16x1xf32>
    %53 = arith.mulf %47, %47 : vector<16x1xf32>
    %54 = arith.subf %52, %53 : vector<16x1xf32>
    %55 = vector.broadcast %47 : vector<16x1xf32> to vector<16x128xf32>
    %56 = arith.subf %39, %55 : vector<16x128xf32>
    %cst_28 = arith.constant 9.99999997E-7 : f32
    %57 = vector.broadcast %cst_28 : f32 to vector<16x1xf32>
    %58 = arith.addf %54, %57 : vector<16x1xf32>
    %59 = math.rsqrt %58 : vector<16x1xf32>
    %60 = vector.broadcast %59 : vector<16x1xf32> to vector<16x128xf32>
    %61 = arith.mulf %56, %60 : vector<16x128xf32>
    %62 = vector.broadcast %41 : vector<1x128xf32> to vector<16x128xf32>
    %63 = arith.mulf %61, %62 : vector<16x128xf32>
    %64 = vector.broadcast %43 : vector<1x128xf32> to vector<16x128xf32>
    %65 = arith.addf %63, %64 : vector<16x128xf32>
    %66 = arith.truncf %65 : vector<16x128xf32> to vector<16x128xbf16>
    %c0_29 = arith.constant 0 : index
    %c0_30 = arith.constant 0 : index
    %c0_31 = arith.constant 0 : index
    %67 = vector.load %arg7[%c0_29, %c0_30, %c0_31] : memref<1x128x64xbf16, #tpu.memory_space<vmem>>, vector<1x128x64xbf16>
    %68 = vector.shape_cast %67 : vector<1x128x64xbf16> to vector<128x64xbf16>
    %cst_32 = arith.constant dense<0.000000e+00> : vector<16x64xf32>
    %69 = tpu.matmul %66, %68, %cst_32 {dimension_numbers = #tpu.dot_dimension_numbers<[1], [0], [0], [1], [0, 0, 1, 1], [], []>} : vector<16x128xbf16>, vector<128x64xbf16>, vector<16x64xf32> -> vector<16x64xf32>
    %c0_33 = arith.constant 0 : index
    %c0_34 = arith.constant 0 : index
    %c0_35 = arith.constant 0 : index
    %70 = vector.load %arg8[%c0_33, %c0_34, %c0_35] : memref<1x1x64xf32, #tpu.memory_space<vmem>>, vector<1x1x64xf32>
    %71 = vector.shape_cast %70 : vector<1x1x64xf32> to vector<1x64xf32>
    %72 = vector.broadcast %71 : vector<1x64xf32> to vector<16x64xf32>
    %73 = arith.addf %69, %72 : vector<16x64xf32>
    %cst_36 = arith.constant 0.000000e+00 : f32
    %74 = vector.broadcast %cst_36 : f32 to vector<16x64xf32>
    %75 = arith.maximumf %73, %74 : vector<16x64xf32>
    %76 = arith.truncf %75 : vector<16x64xf32> to vector<16x64xbf16>
    %c0_37 = arith.constant 0 : index
    %c0_38 = arith.constant 0 : index
    %c0_39 = arith.constant 0 : index
    %77 = vector.load %arg9[%c0_37, %c0_38, %c0_39] : memref<1x64x128xbf16, #tpu.memory_space<vmem>>, vector<1x64x128xbf16>
    %78 = vector.shape_cast %77 : vector<1x64x128xbf16> to vector<64x128xbf16>
    %cst_40 = arith.constant dense<0.000000e+00> : vector<16x128xf32>
    %79 = tpu.matmul %76, %78, %cst_40 {dimension_numbers = #tpu.dot_dimension_numbers<[1], [0], [0], [1], [0, 0, 1, 1], [], []>} : vector<16x64xbf16>, vector<64x128xbf16>, vector<16x128xf32> -> vector<16x128xf32>
    %c0_41 = arith.constant 0 : index
    %c0_42 = arith.constant 0 : index
    %c0_43 = arith.constant 0 : index
    %80 = vector.load %arg10[%c0_41, %c0_42, %c0_43] : memref<1x1x128xf32, #tpu.memory_space<vmem>>, vector<1x1x128xf32>
    %81 = vector.shape_cast %80 : vector<1x1x128xf32> to vector<1x128xf32>
    %82 = vector.broadcast %81 : vector<1x128xf32> to vector<16x128xf32>
    %83 = arith.addf %79, %82 : vector<16x128xf32>
    %84 = arith.addf %83, %65 : vector<16x128xf32>
    %c0_44 = arith.constant 0 : index
    %c0_45 = arith.constant 0 : index
    %c0_46 = arith.constant 0 : index
    %85 = vector.load %arg11[%c0_44, %c0_45, %c0_46] : memref<1x1x128xf32, #tpu.memory_space<vmem>>, vector<1x1x128xf32>
    %86 = vector.shape_cast %85 : vector<1x1x128xf32> to vector<1x128xf32>
    %c0_47 = arith.constant 0 : index
    %c0_48 = arith.constant 0 : index
    %c0_49 = arith.constant 0 : index
    %87 = vector.load %arg12[%c0_47, %c0_48, %c0_49] : memref<1x1x128xf32, #tpu.memory_space<vmem>>, vector<1x1x128xf32>
    %88 = vector.shape_cast %87 : vector<1x1x128xf32> to vector<1x128xf32>
    %cst_50 = arith.constant dense<0.000000e+00> : vector<16xf32>
    %89 = vector.multi_reduction <add>, %84, %cst_50 [1] : vector<16x128xf32> to vector<16xf32>
    %90 = vector.shape_cast %89 : vector<16xf32> to vector<16x1xf32>
    %cst_51 = arith.constant 3.125000e-02 : f32
    %91 = vector.broadcast %cst_51 : f32 to vector<16x1xf32>
    %92 = arith.mulf %90, %91 : vector<16x1xf32>
    %93 = arith.mulf %84, %84 : vector<16x128xf32>
    %cst_52 = arith.constant dense<0.000000e+00> : vector<16xf32>
    %94 = vector.multi_reduction <add>, %93, %cst_52 [1] : vector<16x128xf32> to vector<16xf32>
    %95 = vector.shape_cast %94 : vector<16xf32> to vector<16x1xf32>
    %cst_53 = arith.constant 3.125000e-02 : f32
    %96 = vector.broadcast %cst_53 : f32 to vector<16x1xf32>
    %97 = arith.mulf %95, %96 : vector<16x1xf32>
    %98 = arith.mulf %92, %92 : vector<16x1xf32>
    %99 = arith.subf %97, %98 : vector<16x1xf32>
    %100 = vector.broadcast %92 : vector<16x1xf32> to vector<16x128xf32>
    %101 = arith.subf %84, %100 : vector<16x128xf32>
    %cst_54 = arith.constant 9.99999997E-7 : f32
    %102 = vector.broadcast %cst_54 : f32 to vector<16x1xf32>
    %103 = arith.addf %99, %102 : vector<16x1xf32>
    %104 = math.rsqrt %103 : vector<16x1xf32>
    %105 = vector.broadcast %104 : vector<16x1xf32> to vector<16x128xf32>
    %106 = arith.mulf %101, %105 : vector<16x128xf32>
    %107 = vector.broadcast %86 : vector<1x128xf32> to vector<16x128xf32>
    %108 = arith.mulf %106, %107 : vector<16x128xf32>
    %109 = vector.broadcast %88 : vector<1x128xf32> to vector<16x128xf32>
    %110 = arith.addf %108, %109 : vector<16x128xf32>
    %c0_55 = arith.constant 0 : index
    %c0_56 = arith.constant 0 : index
    %111 = vector.load %arg13[%c0_55, %c0_56] : memref<16x128xf32, #tpu.memory_space<vmem>>, vector<16x128xf32>
    tpu.vector_store %arg13[%c0_55, %c0_56], %110 {strides = array<i32>} : memref<16x128xf32, #tpu.memory_space<vmem>>, vector<16x128xf32>,
    return
  }
  func.func @transform_0(%arg0: i32) -> (i32, i32) {
    %c0_i32 = arith.constant 0 : i32
    %c0_i32_0 = arith.constant 0 : i32
    %c0_i32_1 = arith.constant 0 : i32
    return %c0_i32, %c0_i32_0 : i32, i32
  }
  func.func @transform_1(%arg0: i32) -> (i32, i32) {
    %c0_i32 = arith.constant 0 : i32
    %c0_i32_0 = arith.constant 0 : i32
    %c0_i32_1 = arith.constant 0 : i32
    return %c0_i32, %c0_i32_0 : i32, i32
  }
  func.func @transform_2(%arg0: i32) -> (i32, i32, i32, i32) {
    %c0_i32 = arith.constant 0 : i32
    %c0_i32_0 = arith.constant 0 : i32
    %c0_i32_1 = arith.constant 0 : i32
    %c0_i32_2 = arith.constant 0 : i32
    return %arg0, %c0_i32, %c0_i32_0, %c0_i32_1 : i32, i32, i32, i32
  }
  func.func @transform_3(%arg0: i32) -> (i32, i32, i32, i32) {
    %c0_i32 = arith.constant 0 : i32
    %c0_i32_0 = arith.constant 0 : i32
    %c0_i32_1 = arith.constant 0 : i32
    %c0_i32_2 = arith.constant 0 : i32
    return %arg0, %c0_i32, %c0_i32_0, %c0_i32_1 : i32, i32, i32, i32
  }
  func.func @transform_4(%arg0: i32) -> (i32, i32, i32) {
    %c0_i32 = arith.constant 0 : i32
    %c0_i32_0 = arith.constant 0 : i32
    %c0_i32_1 = arith.constant 0 : i32
    return %arg0, %c0_i32, %c0_i32_0 : i32, i32, i32
  }
  func.func @transform_5(%arg0: i32) -> (i32, i32, i32) {
    %c0_i32 = arith.constant 0 : i32
    %c0_i32_0 = arith.constant 0 : i32
    %c0_i32_1 = arith.constant 0 : i32
    return %arg0, %c0_i32, %c0_i32_0 : i32, i32, i32
  }
  func.func @transform_6(%arg0: i32) -> (i32, i32, i32) {
    %c0_i32 = arith.constant 0 : i32
    %c0_i32_0 = arith.constant 0 : i32
    %c0_i32_1 = arith.constant 0 : i32
    return %arg0, %c0_i32, %c0_i32_0 : i32, i32, i32
  }
  func.func @transform_7(%arg0: i32) -> (i32, i32, i32) {
    %c0_i32 = arith.constant 0 : i32
    %c0_i32_0 = arith.constant 0 : i32
    %c0_i32_1 = arith.constant 0 : i32
    return %arg0, %c0_i32, %c0_i32_0 : i32, i32, i32
  }
  func.func @transform_8(%arg0: i32) -> (i32, i32, i32) {
    %c0_i32 = arith.constant 0 : i32
    %c0_i32_0 = arith.constant 0 : i32
    %c0_i32_1 = arith.constant 0 : i32
    return %arg0, %c0_i32, %c0_i32_0 : i32, i32, i32
  }
  func.func @transform_9(%arg0: i32) -> (i32, i32, i32) {
    %c0_i32 = arith.constant 0 : i32
    %c0_i32_0 = arith.constant 0 : i32
    %c0_i32_1 = arith.constant 0 : i32
    return %arg0, %c0_i32, %c0_i32_0 : i32, i32, i32
  }
  func.func @transform_10(%arg0: i32) -> (i32, i32, i32) {
    %c0_i32 = arith.constant 0 : i32
    %c0_i32_0 = arith.constant 0 : i32
    %c0_i32_1 = arith.constant 0 : i32
    return %arg0, %c0_i32, %c0_i32_0 : i32, i32, i32
  }
  func.func @transform_11(%arg0: i32) -> (i32, i32, i32) {
    %c0_i32 = arith.constant 0 : i32
    %c0_i32_0 = arith.constant 0 : i32
    %c0_i32_1 = arith.constant 0 : i32
    return %arg0, %c0_i32, %c0_i32_0 : i32, i32, i32
  }
  func.func @transform_12(%arg0: i32) -> (i32, i32) {
    %c0_i32 = arith.constant 0 : i32
    %c0_i32_0 = arith.constant 0 : i32
    %c0_i32_1 = arith.constant 0 : i32
    return %c0_i32, %c0_i32_0 : i32, i32
  }
}

</mosaic_0001>

<llo_original>
// kernel: tpu_custom_call.1
$region0: #{tpu_custom_call.1}
  #allocation0 [shape = 'u32[]', space=smem, size = 0x4, offset = 0x4, fixed_abs, tag = 'smem constant byte address 0x4 - core index']
  #allocation1 [shape = 'u32[72,128]{1,0:T(1,128)}', space=vmem, size = 0x9000, scoped, tag = 'internal scratch']
  %s0 = inlined_call_operand.vmem [shape: f32[16,128], index: 0, kind: input, shape index: {}]
  %s1 = inlined_call_operand.vmem [shape: f32[16,16], index: 1, kind: input, shape index: {}]
  %s2 = inlined_call_operand.vmem [shape: bf16[2,12,128,8], index: 2, kind: input, shape index: {}]
  %s3 = inlined_call_operand.vmem [shape: bf16[2,4,8,128], index: 3, kind: input, shape index: {}]
  %s4 = inlined_call_operand.vmem [shape: f32[2,1,128], index: 4, kind: input, shape index: {}]
  %s5 = inlined_call_operand.vmem [shape: f32[2,1,128], index: 5, kind: input, shape index: {}]
  %s6 = inlined_call_operand.vmem [shape: bf16[2,128,64], index: 6, kind: input, shape index: {}]
  %s7 = inlined_call_operand.vmem [shape: f32[2,1,64], index: 7, kind: input, shape index: {}]
  %s8 = inlined_call_operand.vmem [shape: bf16[2,64,128], index: 8, kind: input, shape index: {}]
  %s9 = inlined_call_operand.vmem [shape: f32[2,1,128], index: 9, kind: input, shape index: {}]
  %s10 = inlined_call_operand.vmem [shape: f32[2,1,128], index: 10, kind: input, shape index: {}]
  %s11 = inlined_call_operand.vmem [shape: f32[2,1,128], index: 11, kind: input, shape index: {}]
  %s12 = inlined_call_operand.hbm [shape: f32[16,128], index: 12, kind: output, shape index: {}]
  %s13 = sld [smem:[#allocation0]]
  $region85: #{tpu_custom_call.1} parent=0
    _
  %s15 = ssub.s32 1, %s13
  %s16 = scalar_select 0, %s15, %s13
  $region1: #{tpu_custom_call.1} parent=0
    #allocation2 [shape = 'u8[8192]{0}', space=vmem, size = 0x2000, scoped, tag = 'output window, operand 0, single buffered']
    #allocation3 [shape = 's32[2]{0}', space=sflag, size = 0x8, scoped, tag = 'scoped memory for tpu_custom_call.1']
    %17 = vsyncpa [#allocation3], 0
    loop: start=0, step=1, limit=4
    $region2: #{tpu_custom_call.1} parent=1 // loop_pre_header
      _
    $region3: #{tpu_custom_call.1} parent=1 // loop_header
      %s19 = sphi 0, %s23
      %p20 = scmp.ge.s32.totalorder %s19, 4
      %s27 = sphi 0, %s27
      %s29 = sphi 0, %s27
      %s30 = sphi 0, %s29
      %s44 = sphi 0, %s30
      %s48 = sphi 0, %s48
      %s50 = sphi 0, %s48
      %s51 = sphi 0, %s50
      %s65 = sphi 0, %s51
      %s71 = sphi 0, %s73
      %s74 = sphi 0, %s71
      %s75 = sphi 0, %s74
      %s91 = sphi 0, %s75
      %s97 = sphi 0, %s99
      %s100 = sphi 0, %s97
      %s101 = sphi 0, %s100
      %s117 = sphi 0, %s101
      %s123 = sphi 0, %s125
      %s126 = sphi 0, %s123
      %s127 = sphi 0, %s126
      %s143 = sphi 0, %s127
      %s149 = sphi 0, %s151
      %s152 = sphi 0, %s149
      %s153 = sphi 0, %s152
      %s169 = sphi 0, %s153
      %s175 = sphi 0, %s177
      %s178 = sphi 0, %s175
      %s179 = sphi 0, %s178
      %s195 = sphi 0, %s179
      %s201 = sphi 0, %s203
      %s204 = sphi 0, %s201
      %s205 = sphi 0, %s204
      %s221 = sphi 0, %s205
      %s227 = sphi 0, %s229
      %s230 = sphi 0, %s227
      %s231 = sphi 0, %s230
      %s247 = sphi 0, %s231
      %s253 = sphi 0, %s255
      %s256 = sphi 0, %s253
      %s257 = sphi 0, %s256
      %s273 = sphi 0, %s257
      %s279 = sphi 0, %s281
      %s282 = sphi 0, %s279
      %s283 = sphi 0, %s282
      %s299 = sphi 0, %s283
      %s305 = sphi 0, %s307
      %s308 = sphi 0, %s305
      %s309 = sphi 0, %s308
      %s325 = sphi 0, %s309
      %s329 = sphi 0, %s329
      %s331 = sphi 0, %s329
      %s332 = sphi 0, %s331
      %s346 = sphi 0, %s332
    $region4: #{tpu_custom_call.1} parent=1 // loop_header_branch
      %22 = sbr.rel (%p20) target = $region8
    $region5: #{tpu_custom_call.1} parent=1 // loop_body
      %s24 = ssub.s32 %s19, 1
      %s25 = ssub.s32 %s19, 2
      %s26 = sadd.s32 %s19, 1
      %s28 = sadd.s32 %s27, 1
      %p31 = scmp.eq.s32.totalorder %s19, 1
      %p32 = scmp.ne.s32.totalorder %s27, %s29
      %p33 = scmp.eq.s32.totalorder %s19, 0
      %p34 = por %p32, %p33
      %p35 = scmp.ne.s32.totalorder %s27, %s29
      %p36 = scmp.eq.s32.totalorder %s24, 1
      %p37 = por %p35, %p36
      %p38 = scmp.ne.s32.totalorder %s29, %s30
      %p39 = scmp.eq.s32.totalorder %s24, 0
      %p40 = por %p38, %p39
      %p41 = scmp.ne.s32.totalorder %s29, %s30
      %p42 = scmp.eq.s32.totalorder %s25, 1
      %p43 = por %p41, %p42
      %p45 = scmp.ne.s32.totalorder %s30, %s44
      %p46 = scmp.eq.s32.totalorder %s25, 0
      %p47 = por %p45, %p46
      %s49 = sadd.s32 %s48, 1
      %p52 = scmp.eq.s32.totalorder %s19, 1
      %p53 = scmp.ne.s32.totalorder %s48, %s50
      %p54 = scmp.eq.s32.totalorder %s19, 0
      %p55 = por %p53, %p54
      %p56 = scmp.ne.s32.totalorder %s48, %s50
      %p57 = scmp.eq.s32.totalorder %s24, 1
      %p58 = por %p56, %p57
      %p59 = scmp.ne.s32.totalorder %s50, %s51
      %p60 = scmp.eq.s32.totalorder %s24, 0
      %p61 = por %p59, %p60
      %p62 = scmp.ne.s32.totalorder %s50, %s51
      %p63 = scmp.eq.s32.totalorder %s25, 1
      %p64 = por %p62, %p63
      %p66 = scmp.ne.s32.totalorder %s51, %s65
      %p67 = scmp.eq.s32.totalorder %s25, 0
      %p68 = por %p66, %p67
      %s69 = ssub.s32 %s19, %s26
      %p70 = scmp.eq.s32.totalorder %s69, 0
      %s72 = sadd.s32 %s71, 1
      %s73 = scalar_select %p70, %s71, %s72
      %p76 = pneg %p70
      %p77 = scmp.eq.s32.totalorder %s19, 1
      %p78 = por %p76, %p77
      %p79 = scmp.ne.s32.totalorder %s71, %s74
      %p80 = scmp.eq.s32.totalorder %s19, 0
      %p81 = por %p79, %p80
      %p82 = scmp.ne.s32.totalorder %s71, %s74
      %p83 = scmp.eq.s32.totalorder %s24, 1
      %p84 = por %p82, %p83
      %p85 = scmp.ne.s32.totalorder %s74, %s75
      %p86 = scmp.eq.s32.totalorder %s24, 0
      %p87 = por %p85, %p86
      %p88 = scmp.ne.s32.totalorder %s74, %s75
      %p89 = scmp.eq.s32.totalorder %s25, 1
      %p90 = por %p88, %p89
      %p92 = scmp.ne.s32.totalorder %s75, %s91
      %p93 = scmp.eq.s32.totalorder %s25, 0
      %p94 = por %p92, %p93
      %s95 = ssub.s32 %s19, %s26
      %p96 = scmp.eq.s32.totalorder %s95, 0
      %s98 = sadd.s32 %s97, 1
      %s99 = scalar_select %p96, %s97, %s98
      %p102 = pneg %p96
      %p103 = scmp.eq.s32.totalorder %s19, 1
      %p104 = por %p102, %p103
      %p105 = scmp.ne.s32.totalorder %s97, %s100
      %p106 = scmp.eq.s32.totalorder %s19, 0
      %p107 = por %p105, %p106
      %p108 = scmp.ne.s32.totalorder %s97, %s100
      %p109 = scmp.eq.s32.totalorder %s24, 1
      %p110 = por %p108, %p109
      %p111 = scmp.ne.s32.totalorder %s100, %s101
      %p112 = scmp.eq.s32.totalorder %s24, 0
      %p113 = por %p111, %p112
      %p114 = scmp.ne.s32.totalorder %s100, %s101
      %p115 = scmp.eq.s32.totalorder %s25, 1
      %p116 = por %p114, %p115
      %p118 = scmp.ne.s32.totalorder %s101, %s117
      %p119 = scmp.eq.s32.totalorder %s25, 0
      %p120 = por %p118, %p119
      %s121 = ssub.s32 %s19, %s26
      %p122 = scmp.eq.s32.totalorder %s121, 0
      %s124 = sadd.s32 %s123, 1
      %s125 = scalar_select %p122, %s123, %s124
      %p128 = pneg %p122
      %p129 = scmp.eq.s32.totalorder %s19, 1
      %p130 = por %p128, %p129
      %p131 = scmp.ne.s32.totalorder %s123, %s126
      %p132 = scmp.eq.s32.totalorder %s19, 0
      %p133 = por %p131, %p132
      %p134 = scmp.ne.s32.totalorder %s123, %s126
      %p135 = scmp.eq.s32.totalorder %s24, 1
      %p136 = por %p134, %p135
      %p137 = scmp.ne.s32.totalorder %s126, %s127
      %p138 = scmp.eq.s32.totalorder %s24, 0
      %p139 = por %p137, %p138
      %p140 = scmp.ne.s32.totalorder %s126, %s127
      %p141 = scmp.eq.s32.totalorder %s25, 1
      %p142 = por %p140, %p141
      %p144 = scmp.ne.s32.totalorder %s127, %s143
      %p145 = scmp.eq.s32.totalorder %s25, 0
      %p146 = por %p144, %p145
      %s147 = ssub.s32 %s19, %s26
      %p148 = scmp.eq.s32.totalorder %s147, 0
      %s150 = sadd.s32 %s149, 1
      %s151 = scalar_select %p148, %s149, %s150
      %p154 = pneg %p148
      %p155 = scmp.eq.s32.totalorder %s19, 1
      %p156 = por %p154, %p155
      %p157 = scmp.ne.s32.totalorder %s149, %s152
      %p158 = scmp.eq.s32.totalorder %s19, 0
      %p159 = por %p157, %p158
      %p160 = scmp.ne.s32.totalorder %s149, %s152
      %p161 = scmp.eq.s32.totalorder %s24, 1
      %p162 = por %p160, %p161
      %p163 = scmp.ne.s32.totalorder %s152, %s153
      %p164 = scmp.eq.s32.totalorder %s24, 0
      %p165 = por %p163, %p164
      %p166 = scmp.ne.s32.totalorder %s152, %s153
      %p167 = scmp.eq.s32.totalorder %s25, 1
      %p168 = por %p166, %p167
      %p170 = scmp.ne.s32.totalorder %s153, %s169
      %p171 = scmp.eq.s32.totalorder %s25, 0
      %p172 = por %p170, %p171
      %s173 = ssub.s32 %s19, %s26
      %p174 = scmp.eq.s32.totalorder %s173, 0
      %s176 = sadd.s32 %s175, 1
      %s177 = scalar_select %p174, %s175, %s176
      %p180 = pneg %p174
      %p181 = scmp.eq.s32.totalorder %s19, 1
      %p182 = por %p180, %p181
      %p183 = scmp.ne.s32.totalorder %s175, %s178
      %p184 = scmp.eq.s32.totalorder %s19, 0
      %p185 = por %p183, %p184
      %p186 = scmp.ne.s32.totalorder %s175, %s178
      %p187 = scmp.eq.s32.totalorder %s24, 1
      %p188 = por %p186, %p187
      %p189 = scmp.ne.s32.totalorder %s178, %s179
      %p190 = scmp.eq.s32.totalorder %s24, 0
      %p191 = por %p189, %p190
      %p192 = scmp.ne.s32.totalorder %s178, %s179
      %p193 = scmp.eq.s32.totalorder %s25, 1
      %p194 = por %p192, %p193
      %p196 = scmp.ne.s32.totalorder %s179, %s195
      %p197 = scmp.eq.s32.totalorder %s25, 0
      %p198 = por %p196, %p197
      %s199 = ssub.s32 %s19, %s26
      %p200 = scmp.eq.s32.totalorder %s199, 0
      %s202 = sadd.s32 %s201, 1
      %s203 = scalar_select %p200, %s201, %s202
      %p206 = pneg %p200
      %p207 = scmp.eq.s32.totalorder %s19, 1
      %p208 = por %p206, %p207
      %p209 = scmp.ne.s32.totalorder %s201, %s204
      %p210 = scmp.eq.s32.totalorder %s19, 0
      %p211 = por %p209, %p210
      %p212 = scmp.ne.s32.totalorder %s201, %s204
      %p213 = scmp.eq.s32.totalorder %s24, 1
      %p214 = por %p212, %p213
      %p215 = scmp.ne.s32.totalorder %s204, %s205
      %p216 = scmp.eq.s32.totalorder %s24, 0
      %p217 = por %p215, %p216
      %p218 = scmp.ne.s32.totalorder %s204, %s205
      %p219 = scmp.eq.s32.totalorder %s25, 1
      %p220 = por %p218, %p219
      %p222 = scmp.ne.s32.totalorder %s205, %s221
      %p223 = scmp.eq.s32.totalorder %s25, 0
      %p224 = por %p222, %p223
      %s225 = ssub.s32 %s19, %s26
      %p226 = scmp.eq.s32.totalorder %s225, 0
      %s228 = sadd.s32 %s227, 1
      %s229 = scalar_select %p226, %s227, %s228
      %p232 = pneg %p226
      %p233 = scmp.eq.s32.totalorder %s19, 1
      %p234 = por %p232, %p233
      %p235 = scmp.ne.s32.totalorder %s227, %s230
      %p236 = scmp.eq.s32.totalorder %s19, 0
      %p237 = por %p235, %p236
      %p238 = scmp.ne.s32.totalorder %s227, %s230
      %p239 = scmp.eq.s32.totalorder %s24, 1
      %p240 = por %p238, %p239
      %p241 = scmp.ne.s32.totalorder %s230, %s231
      %p242 = scmp.eq.s32.totalorder %s24, 0
      %p243 = por %p241, %p242
      %p244 = scmp.ne.s32.totalorder %s230, %s231
      %p245 = scmp.eq.s32.totalorder %s25, 1
      %p246 = por %p244, %p245
      %p248 = scmp.ne.s32.totalorder %s231, %s247
      %p249 = scmp.eq.s32.totalorder %s25, 0
      %p250 = por %p248, %p249
      %s251 = ssub.s32 %s19, %s26
      %p252 = scmp.eq.s32.totalorder %s251, 0
      %s254 = sadd.s32 %s253, 1
      %s255 = scalar_select %p252, %s253, %s254
      %p258 = pneg %p252
      %p259 = scmp.eq.s32.totalorder %s19, 1
      %p260 = por %p258, %p259
      %p261 = scmp.ne.s32.totalorder %s253, %s256
      %p262 = scmp.eq.s32.totalorder %s19, 0
      %p263 = por %p261, %p262
      %p264 = scmp.ne.s32.totalorder %s253, %s256
      %p265 = scmp.eq.s32.totalorder %s24, 1
      %p266 = por %p264, %p265
      %p267 = scmp.ne.s32.totalorder %s256, %s257
      %p268 = scmp.eq.s32.totalorder %s24, 0
      %p269 = por %p267, %p268
      %p270 = scmp.ne.s32.totalorder %s256, %s257
      %p271 = scmp.eq.s32.totalorder %s25, 1
      %p272 = por %p270, %p271
      %p274 = scmp.ne.s32.totalorder %s257, %s273
      %p275 = scmp.eq.s32.totalorder %s25, 0
      %p276 = por %p274, %p275
      %s277 = ssub.s32 %s19, %s26
      %p278 = scmp.eq.s32.totalorder %s277, 0
      %s280 = sadd.s32 %s279, 1
      %s281 = scalar_select %p278, %s279, %s280
      %p284 = pneg %p278
      %p285 = scmp.eq.s32.totalorder %s19, 1
      %p286 = por %p284, %p285
      %p287 = scmp.ne.s32.totalorder %s279, %s282
      %p288 = scmp.eq.s32.totalorder %s19, 0
      %p289 = por %p287, %p288
      %p290 = scmp.ne.s32.totalorder %s279, %s282
      %p291 = scmp.eq.s32.totalorder %s24, 1
      %p292 = por %p290, %p291
      %p293 = scmp.ne.s32.totalorder %s282, %s283
      %p294 = scmp.eq.s32.totalorder %s24, 0
      %p295 = por %p293, %p294
      %p296 = scmp.ne.s32.totalorder %s282, %s283
      %p297 = scmp.eq.s32.totalorder %s25, 1
      %p298 = por %p296, %p297
      %p300 = scmp.ne.s32.totalorder %s283, %s299
      %p301 = scmp.eq.s32.totalorder %s25, 0
      %p302 = por %p300, %p301
      %s303 = ssub.s32 %s19, %s26
      %p304 = scmp.eq.s32.totalorder %s303, 0
      %s306 = sadd.s32 %s305, 1
      %s307 = scalar_select %p304, %s305, %s306
      %p310 = pneg %p304
      %p311 = scmp.eq.s32.totalorder %s19, 1
      %p312 = por %p310, %p311
      %p313 = scmp.ne.s32.totalorder %s305, %s308
      %p314 = scmp.eq.s32.totalorder %s19, 0
      %p315 = por %p313, %p314
      %p316 = scmp.ne.s32.totalorder %s305, %s308
      %p317 = scmp.eq.s32.totalorder %s24, 1
      %p318 = por %p316, %p317
      %p319 = scmp.ne.s32.totalorder %s308, %s309
      %p320 = scmp.eq.s32.totalorder %s24, 0
      %p321 = por %p319, %p320
      %p322 = scmp.ne.s32.totalorder %s308, %s309
      %p323 = scmp.eq.s32.totalorder %s25, 1
      %p324 = por %p322, %p323
      %p326 = scmp.ne.s32.totalorder %s309, %s325
      %p327 = scmp.eq.s32.totalorder %s25, 0
      %p328 = por %p326, %p327
      %s330 = sadd.s32 %s329, 1
      %p333 = scmp.eq.s32.totalorder %s19, 1
      %p334 = scmp.ne.s32.totalorder %s329, %s331
      %p335 = scmp.eq.s32.totalorder %s19, 0
      %p336 = por %p334, %p335
      %p337 = scmp.ne.s32.totalorder %s329, %s331
      %p338 = scmp.eq.s32.totalorder %s24, 1
      %p339 = por %p337, %p338
      %p340 = scmp.ne.s32.totalorder %s331, %s332
      %p341 = scmp.eq.s32.totalorder %s24, 0
      %p342 = por %p340, %p341
      %p343 = scmp.ne.s32.totalorder %s331, %s332
      %p344 = scmp.eq.s32.totalorder %s25, 1
      %p345 = por %p343, %p344
      %p347 = scmp.ne.s32.totalorder %s332, %s346
      %p348 = scmp.eq.s32.totalorder %s25, 0
      %p349 = por %p347, %p348
      %p350 = scmp.le.s32.totalorder 1, %s19
      %p351 = scmp.lt.s32.totalorder %s19, 3
      %p352 = pnand %p350, %p351
      %p353 = pneg %p352
      // Predicated region
      $region9: #{tpu_custom_call.1} parent=5 // pred_check
        _
      $region10: #{tpu_custom_call.1} parent=5 // pred_check_branch
        %355 = sbr.rel (%p352) target = $region12
      $region11: #{tpu_custom_call.1} parent=5 // pred_region
        %s356 = ssub.s32 %s19, 1
        // Predicated region
        $region13: #{tpu_custom_call.1} parent=11 // pred_check
          %p357 = pneg %p40
        $region14: #{tpu_custom_call.1} parent=11 // pred_check_branch
          %359 = sbr.rel (%p357) target = $region16
        $region15: #{tpu_custom_call.1} parent=11 // pred_region
          _
        $region16: #{tpu_custom_call.1} parent=11 // pred_fallthru
          _
        // Predicated region
        $region17: #{tpu_custom_call.1} parent=11 // pred_check
          %p360 = pneg %p61
        $region18: #{tpu_custom_call.1} parent=11 // pred_check_branch
          %362 = sbr.rel (%p360) target = $region20
        $region19: #{tpu_custom_call.1} parent=11 // pred_region
          _
        $region20: #{tpu_custom_call.1} parent=11 // pred_fallthru
          _
      $region12: #{tpu_custom_call.1} parent=5 // pred_fallthru
        _
      %p363 = scmp.lt.s32.totalorder %s19, 2
      // Predicated region
      $region21: #{tpu_custom_call.1} parent=5 // pred_check
        %p364 = pneg %p363
      $region22: #{tpu_custom_call.1} parent=5 // pred_check_branch
        %366 = sbr.rel (%p364) target = $region24
      $region23: #{tpu_custom_call.1} parent=5 // pred_region
        // Predicated region
        $region25: #{tpu_custom_call.1} parent=23 // pred_check
          %p367 = pneg %p81
        $region26: #{tpu_custom_call.1} parent=23 // pred_check_branch
          %369 = sbr.rel (%p367) target = $region28
        $region27: #{tpu_custom_call.1} parent=23 // pred_region
          %p370 = scmp.lt.s32.totalorder %s19, 1
          %s371 = scalar_select %p370, %s19, 1
          %s372 = smul.addr %s371, 192
          %s373 = smul.addr %s372, 4
          %s374 = scalar_lea.vmem %s2, %s373
        $region28: #{tpu_custom_call.1} parent=23 // pred_fallthru
          _
        // Predicated region
        $region29: #{tpu_custom_call.1} parent=23 // pred_check
          %p375 = pneg %p107
        $region30: #{tpu_custom_call.1} parent=23 // pred_check_branch
          %377 = sbr.rel (%p375) target = $region32
        $region31: #{tpu_custom_call.1} parent=23 // pred_region
          %p378 = scmp.lt.s32.totalorder %s19, 1
          %s379 = scalar_select %p378, %s19, 1
          %s380 = smul.addr %s379, 4
          %s381 = smul.addr %s380, 4
          %s382 = scalar_lea.vmem %s3, %s381
        $region32: #{tpu_custom_call.1} parent=23 // pred_fallthru
          _
        // Predicated region
        $region33: #{tpu_custom_call.1} parent=23 // pred_check
          %p383 = pneg %p133
        $region34: #{tpu_custom_call.1} parent=23 // pred_check_branch
          %385 = sbr.rel (%p383) target = $region36
        $region35: #{tpu_custom_call.1} parent=23 // pred_region
          %p386 = scmp.lt.s32.totalorder %s19, 1
          %s387 = scalar_select %p386, %s19, 1
          %s388 = scalar_lea.vmem %s4, %s387
        $region36: #{tpu_custom_call.1} parent=23 // pred_fallthru
          _
        // Predicated region
        $region37: #{tpu_custom_call.1} parent=23 // pred_check
          %p389 = pneg %p159
        $region38: #{tpu_custom_call.1} parent=23 // pred_check_branch
          %391 = sbr.rel (%p389) target = $region40
        $region39: #{tpu_custom_call.1} parent=23 // pred_region
          %p392 = scmp.lt.s32.totalorder %s19, 1
          %s393 = scalar_select %p392, %s19, 1
          %s394 = scalar_lea.vmem %s5, %s393
        $region40: #{tpu_custom_call.1} parent=23 // pred_fallthru
          _
        // Predicated region
        $region41: #{tpu_custom_call.1} parent=23 // pred_check
          %p395 = pneg %p185
        $region42: #{tpu_custom_call.1} parent=23 // pred_check_branch
          %397 = sbr.rel (%p395) target = $region44
        $region43: #{tpu_custom_call.1} parent=23 // pred_region
          %p398 = scmp.lt.s32.totalorder %s19, 1
          %s399 = scalar_select %p398, %s19, 1
          %s400 = smul.addr %s399, 16
          %s401 = smul.addr %s400, 4
          %s402 = scalar_lea.vmem %s6, %s401
        $region44: #{tpu_custom_call.1} parent=23 // pred_fallthru
          _
        // Predicated region
        $region45: #{tpu_custom_call.1} parent=23 // pred_check
          %p403 = pneg %p211
        $region46: #{tpu_custom_call.1} parent=23 // pred_check_branch
          %405 = sbr.rel (%p403) target = $region48
        $region47: #{tpu_custom_call.1} parent=23 // pred_region
          %p406 = scmp.lt.s32.totalorder %s19, 1
          %s407 = scalar_select %p406, %s19, 1
          %s408 = scalar_lea.vmem %s7, %s407
        $region48: #{tpu_custom_call.1} parent=23 // pred_fallthru
          _
        // Predicated region
        $region49: #{tpu_custom_call.1} parent=23 // pred_check
          %p409 = pneg %p237
        $region50: #{tpu_custom_call.1} parent=23 // pred_check_branch
          %411 = sbr.rel (%p409) target = $region52
        $region51: #{tpu_custom_call.1} parent=23 // pred_region
          %p412 = scmp.lt.s32.totalorder %s19, 1
          %s413 = scalar_select %p412, %s19, 1
          %s414 = smul.addr %s413, 8
          %s415 = smul.addr %s414, 4
          %s416 = scalar_lea.vmem %s8, %s415
        $region52: #{tpu_custom_call.1} parent=23 // pred_fallthru
          _
        // Predicated region
        $region53: #{tpu_custom_call.1} parent=23 // pred_check
          %p417 = pneg %p263
        $region54: #{tpu_custom_call.1} parent=23 // pred_check_branch
          %419 = sbr.rel (%p417) target = $region56
        $region55: #{tpu_custom_call.1} parent=23 // pred_region
          %p420 = scmp.lt.s32.totalorder %s19, 1
          %s421 = scalar_select %p420, %s19, 1
          %s422 = scalar_lea.vmem %s9, %s421
        $region56: #{tpu_custom_call.1} parent=23 // pred_fallthru
          _
        // Predicated region
        $region57: #{tpu_custom_call.1} parent=23 // pred_check
          %p423 = pneg %p289
        $region58: #{tpu_custom_call.1} parent=23 // pred_check_branch
          %425 = sbr.rel (%p423) target = $region60
        $region59: #{tpu_custom_call.1} parent=23 // pred_region
          %p426 = scmp.lt.s32.totalorder %s19, 1
          %s427 = scalar_select %p426, %s19, 1
          %s428 = scalar_lea.vmem %s10, %s427
        $region60: #{tpu_custom_call.1} parent=23 // pred_fallthru
          _
        // Predicated region
        $region61: #{tpu_custom_call.1} parent=23 // pred_check
          %p429 = pneg %p315
        $region62: #{tpu_custom_call.1} parent=23 // pred_check_branch
          %431 = sbr.rel (%p429) target = $region64
        $region63: #{tpu_custom_call.1} parent=23 // pred_region
          %p432 = scmp.lt.s32.totalorder %s19, 1
          %s433 = scalar_select %p432, %s19, 1
          %s434 = scalar_lea.vmem %s11, %s433
        $region64: #{tpu_custom_call.1} parent=23 // pred_fallthru
          _
      $region24: #{tpu_custom_call.1} parent=5 // pred_fallthru
        _
      %p435 = scmp.le.s32.totalorder 1, %s19
      %p436 = scmp.lt.s32.totalorder %s19, 3
      %p437 = pnand %p435, %p436
      %p438 = pneg %p437
      // Predicated region
      $region65: #{tpu_custom_call.1} parent=5 // pred_check
        _
      $region66: #{tpu_custom_call.1} parent=5 // pred_check_branch
        %440 = sbr.rel (%p437) target = $region68
      $region67: #{tpu_custom_call.1} parent=5 // pred_region
        %s441 = ssub.s32 %s19, 1
        %p442 = pneg %p40
        %p443 = pneg %p37
        %p444 = pneg %p61
        %p445 = pneg %p58
        %p446 = scmp.lt.s32.totalorder %s24, 1
        %s447 = scalar_select %p446, %s24, 1
        %s448 = smul.addr %s447, 192
        %s449 = smul.addr %s448, 4
        %s450 = scalar_lea.vmem %s2, %s449
        %p451 = pneg %p87
        %p452 = pneg %p84
        %p453 = scmp.lt.s32.totalorder %s24, 1
        %s454 = scalar_select %p453, %s24, 1
        %s455 = smul.addr %s454, 4
        %s456 = smul.addr %s455, 4
        %s457 = scalar_lea.vmem %s3, %s456
        %p458 = pneg %p113
        %p459 = pneg %p110
        %p460 = scmp.lt.s32.totalorder %s24, 1
        %s461 = scalar_select %p460, %s24, 1
        %s462 = scalar_lea.vmem %s4, %s461
        %p463 = pneg %p139
        %p464 = pneg %p136
        %p465 = scmp.lt.s32.totalorder %s24, 1
        %s466 = scalar_select %p465, %s24, 1
        %s467 = scalar_lea.vmem %s5, %s466
        %p468 = pneg %p165
        %p469 = pneg %p162
        %p470 = scmp.lt.s32.totalorder %s24, 1
        %s471 = scalar_select %p470, %s24, 1
        %s472 = smul.addr %s471, 16
        %s473 = smul.addr %s472, 4
        %s474 = scalar_lea.vmem %s6, %s473
        %p475 = pneg %p191
        %p476 = pneg %p188
        %p477 = scmp.lt.s32.totalorder %s24, 1
        %s478 = scalar_select %p477, %s24, 1
        %s479 = scalar_lea.vmem %s7, %s478
        %p480 = pneg %p217
        %p481 = pneg %p214
        %p482 = scmp.lt.s32.totalorder %s24, 1
        %s483 = scalar_select %p482, %s24, 1
        %s484 = smul.addr %s483, 8
        %s485 = smul.addr %s484, 4
        %s486 = scalar_lea.vmem %s8, %s485
        %p487 = pneg %p243
        %p488 = pneg %p240
        %p489 = scmp.lt.s32.totalorder %s24, 1
        %s490 = scalar_select %p489, %s24, 1
        %s491 = scalar_lea.vmem %s9, %s490
        %p492 = pneg %p269
        %p493 = pneg %p266
        %p494 = scmp.lt.s32.totalorder %s24, 1
        %s495 = scalar_select %p494, %s24, 1
        %s496 = scalar_lea.vmem %s10, %s495
        %p497 = pneg %p295
        %p498 = pneg %p292
        %p499 = scmp.lt.s32.totalorder %s24, 1
        %s500 = scalar_select %p499, %s24, 1
        %s501 = scalar_lea.vmem %s11, %s500
        %p502 = pneg %p321
        %p503 = pneg %p318
        %p504 = pneg %p342
        %p505 = pneg %p339
        %p506 = scmp.lt.s32.totalorder %s24, 1
        %s507 = scalar_select %p506, %s24, 1
        %s508 = smul.addr %s507, 192
        %s509 = smul.addr %s508, 4
        %s510 = scalar_lea.vmem %s2, %s509
        %p511 = scmp.lt.s32.totalorder %s24, 1
        %s512 = scalar_select %p511, %s24, 1
        %s513 = smul.addr %s512, 4
        %s514 = smul.addr %s513, 4
        %s515 = scalar_lea.vmem %s3, %s514
        %p516 = scmp.lt.s32.totalorder %s24, 1
        %s517 = scalar_select %p516, %s24, 1
        %s518 = scalar_lea.vmem %s4, %s517
        %p519 = scmp.lt.s32.totalorder %s24, 1
        %s520 = scalar_select %p519, %s24, 1
        %s521 = scalar_lea.vmem %s5, %s520
        %p522 = scmp.lt.s32.totalorder %s24, 1
        %s523 = scalar_select %p522, %s24, 1
        %s524 = smul.addr %s523, 16
        %s525 = smul.addr %s524, 4
        %s526 = scalar_lea.vmem %s6, %s525
        %p527 = scmp.lt.s32.totalorder %s24, 1
        %s528 = scalar_select %p527, %s24, 1
        %s529 = scalar_lea.vmem %s7, %s528
        %p530 = scmp.lt.s32.totalorder %s24, 1
        %s531 = scalar_select %p530, %s24, 1
        %s532 = smul.addr %s531, 8
        %s533 = smul.addr %s532, 4
        %s534 = scalar_lea.vmem %s8, %s533
        %p535 = scmp.lt.s32.totalorder %s24, 1
        %s536 = scalar_select %p535, %s24, 1
        %s537 = scalar_lea.vmem %s9, %s536
        %p538 = scmp.lt.s32.totalorder %s24, 1
        %s539 = scalar_select %p538, %s24, 1
        %s540 = scalar_lea.vmem %s10, %s539
        %p541 = scmp.lt.s32.totalorder %s24, 1
        %s542 = scalar_select %p541, %s24, 1
        %s543 = scalar_lea.vmem %s11, %s542
        %p545 = scmp.eq.s32.totalorder %s24, 0
        // Predicated region
        $region69: #{tpu_custom_call.1} parent=67 // pred_check
          %p546 = pneg %p545
        $region70: #{tpu_custom_call.1} parent=67 // pred_check_branch
          %548 = sbr.rel (%p546) target = $region72
        $region71: #{tpu_custom_call.1} parent=67 // pred_region
          %v549 = vld [vmem:[%s0] sm:$0xff]
          %v550 = vld [vmem:[%s0 + $0x8] sm:$0xff]
          %551 = vst [vmem:[#allocation2] sm:$0xff] %v549
          %552 = vst [vmem:[#allocation2 + $0x8] sm:$0xff] %v550
        $region72: #{tpu_custom_call.1} parent=67 // pred_fallthru
          _
        %v553 = vld [vmem:[#allocation2] sm:$0xff]
        %v554 = vld [vmem:[#allocation2 + $0x8] sm:$0xff]
        %v555 = vpack.c.bf16 %v553, %v553
        %v556 = vpack.c.bf16 %v554, %v554
        %v557 = vld [vmem:[%s510] sm:$0xf]
        %v558 = vld [vmem:[%s510 + $0x4] sm:$0xf]
        %v559 = vld [vmem:[%s510 + $0x8] sm:$0xf]
        %v560 = vld [vmem:[%s510 + $0xc] sm:$0xf]
        %v561 = vld [vmem:[%s510 + $0x10] sm:$0xf]
        %v562 = vld [vmem:[%s510 + $0x14] sm:$0xf]
        %v563 = vld [vmem:[%s510 + $0x18] sm:$0xf]
        %v564 = vld [vmem:[%s510 + $0x1c] sm:$0xf]
        %v565 = vld [vmem:[%s510 + $0x20] sm:$0xf]
        %v566 = vld [vmem:[%s510 + $0x24] sm:$0xf]
        %v567 = vld [vmem:[%s510 + $0x28] sm:$0xf]
        %v568 = vld [vmem:[%s510 + $0x2c] sm:$0xf]
        %v569 = vld [vmem:[%s510 + $0x30] sm:$0xf]
        %v570 = vld [vmem:[%s510 + $0x34] sm:$0xf]
        %v571 = vld [vmem:[%s510 + $0x38] sm:$0xf]
        %v572 = vld [vmem:[%s510 + $0x3c] sm:$0xf]
        %v573 = vld [vmem:[%s510 + $0x40] sm:$0xf]
        %v574 = vld [vmem:[%s510 + $0x44] sm:$0xf]
        %v575 = vld [vmem:[%s510 + $0x48] sm:$0xf]
        %v576 = vld [vmem:[%s510 + $0x4c] sm:$0xf]
        %v577 = vld [vmem:[%s510 + $0x50] sm:$0xf]
        %v578 = vld [vmem:[%s510 + $0x54] sm:$0xf]
        %v579 = vld [vmem:[%s510 + $0x58] sm:$0xf]
        %v580 = vld [vmem:[%s510 + $0x5c] sm:$0xf]
        %v581 = vld [vmem:[%s510 + $0x60] sm:$0xf]
        %v582 = vld [vmem:[%s510 + $0x64] sm:$0xf]
        %v583 = vld [vmem:[%s510 + $0x68] sm:$0xf]
        %v584 = vld [vmem:[%s510 + $0x6c] sm:$0xf]
        %v585 = vld [vmem:[%s510 + $0x70] sm:$0xf]
        %v586 = vld [vmem:[%s510 + $0x74] sm:$0xf]
        %v587 = vld [vmem:[%s510 + $0x78] sm:$0xf]
        %v588 = vld [vmem:[%s510 + $0x7c] sm:$0xf]
        %v589 = vld [vmem:[%s510 + $0x80] sm:$0xf]
        %v590 = vld [vmem:[%s510 + $0x84] sm:$0xf]
        %v591 = vld [vmem:[%s510 + $0x88] sm:$0xf]
        %v592 = vld [vmem:[%s510 + $0x8c] sm:$0xf]
        %v593 = vld [vmem:[%s510 + $0x90] sm:$0xf]
        %v594 = vld [vmem:[%s510 + $0x94] sm:$0xf]
        %v595 = vld [vmem:[%s510 + $0x98] sm:$0xf]
        %v596 = vld [vmem:[%s510 + $0x9c] sm:$0xf]
        %v597 = vld [vmem:[%s510 + $0xa0] sm:$0xf]
        %v598 = vld [vmem:[%s510 + $0xa4] sm:$0xf]
        %v599 = vld [vmem:[%s510 + $0xa8] sm:$0xf]
        %v600 = vld [vmem:[%s510 + $0xac] sm:$0xf]
        %v601 = vld [vmem:[%s510 + $0xb0] sm:$0xf]
        %v602 = vld [vmem:[%s510 + $0xb4] sm:$0xf]
        %v603 = vld [vmem:[%s510 + $0xb8] sm:$0xf]
        %v604 = vld [vmem:[%s510 + $0xbc] sm:$0xf]
        %v605 = vld [vmem:[%s510 + $0xc0] sm:$0xf]
        %v606 = vld [vmem:[%s510 + $0xc4] sm:$0xf]
        %v607 = vld [vmem:[%s510 + $0xc8] sm:$0xf]
        %v608 = vld [vmem:[%s510 + $0xcc] sm:$0xf]
        %v609 = vld [vmem:[%s510 + $0xd0] sm:$0xf]
        %v610 = vld [vmem:[%s510 + $0xd4] sm:$0xf]
        %v611 = vld [vmem:[%s510 + $0xd8] sm:$0xf]
        %v612 = vld [vmem:[%s510 + $0xdc] sm:$0xf]
        %v613 = vld [vmem:[%s510 + $0xe0] sm:$0xf]
        %v614 = vld [vmem:[%s510 + $0xe4] sm:$0xf]
        %v615 = vld [vmem:[%s510 + $0xe8] sm:$0xf]
        %v616 = vld [vmem:[%s510 + $0xec] sm:$0xf]
        %v617 = vld [vmem:[%s510 + $0xf0] sm:$0xf]
        %v618 = vld [vmem:[%s510 + $0xf4] sm:$0xf]
        %v619 = vld [vmem:[%s510 + $0xf8] sm:$0xf]
        %v620 = vld [vmem:[%s510 + $0xfc] sm:$0xf]
        %v621 = vld [vmem:[%s510 + $0x100] sm:$0xf]
        %v622 = vld [vmem:[%s510 + $0x104] sm:$0xf]
        %v623 = vld [vmem:[%s510 + $0x108] sm:$0xf]
        %v624 = vld [vmem:[%s510 + $0x10c] sm:$0xf]
        %v625 = vld [vmem:[%s510 + $0x110] sm:$0xf]
        %v626 = vld [vmem:[%s510 + $0x114] sm:$0xf]
        %v627 = vld [vmem:[%s510 + $0x118] sm:$0xf]
        %v628 = vld [vmem:[%s510 + $0x11c] sm:$0xf]
        %v629 = vld [vmem:[%s510 + $0x120] sm:$0xf]
        %v630 = vld [vmem:[%s510 + $0x124] sm:$0xf]
        %v631 = vld [vmem:[%s510 + $0x128] sm:$0xf]
        %v632 = vld [vmem:[%s510 + $0x12c] sm:$0xf]
        %v633 = vld [vmem:[%s510 + $0x130] sm:$0xf]
        %v634 = vld [vmem:[%s510 + $0x134] sm:$0xf]
        %v635 = vld [vmem:[%s510 + $0x138] sm:$0xf]
        %v636 = vld [vmem:[%s510 + $0x13c] sm:$0xf]
        %v637 = vld [vmem:[%s510 + $0x140] sm:$0xf]
        %v638 = vld [vmem:[%s510 + $0x144] sm:$0xf]
        %v639 = vld [vmem:[%s510 + $0x148] sm:$0xf]
        %v640 = vld [vmem:[%s510 + $0x14c] sm:$0xf]
        %v641 = vld [vmem:[%s510 + $0x150] sm:$0xf]
        %v642 = vld [vmem:[%s510 + $0x154] sm:$0xf]
        %v643 = vld [vmem:[%s510 + $0x158] sm:$0xf]
        %v644 = vld [vmem:[%s510 + $0x15c] sm:$0xf]
        %v645 = vld [vmem:[%s510 + $0x160] sm:$0xf]
        %v646 = vld [vmem:[%s510 + $0x164] sm:$0xf]
        %v647 = vld [vmem:[%s510 + $0x168] sm:$0xf]
        %v648 = vld [vmem:[%s510 + $0x16c] sm:$0xf]
        %v649 = vld [vmem:[%s510 + $0x170] sm:$0xf]
        %v650 = vld [vmem:[%s510 + $0x174] sm:$0xf]
        %v651 = vld [vmem:[%s510 + $0x178] sm:$0xf]
        %v652 = vld [vmem:[%s510 + $0x17c] sm:$0xf]
        %v653 = vld [vmem:[%s510 + $0x180] sm:$0xf]
        %v654 = vld [vmem:[%s510 + $0x184] sm:$0xf]
        %v655 = vld [vmem:[%s510 + $0x188] sm:$0xf]
        %v656 = vld [vmem:[%s510 + $0x18c] sm:$0xf]
        %v657 = vld [vmem:[%s510 + $0x190] sm:$0xf]
        %v658 = vld [vmem:[%s510 + $0x194] sm:$0xf]
        %v659 = vld [vmem:[%s510 + $0x198] sm:$0xf]
        %v660 = vld [vmem:[%s510 + $0x19c] sm:$0xf]
        %v661 = vld [vmem:[%s510 + $0x1a0] sm:$0xf]
        %v662 = vld [vmem:[%s510 + $0x1a4] sm:$0xf]
        %v663 = vld [vmem:[%s510 + $0x1a8] sm:$0xf]
        %v664 = vld [vmem:[%s510 + $0x1ac] sm:$0xf]
        %v665 = vld [vmem:[%s510 + $0x1b0] sm:$0xf]
        %v666 = vld [vmem:[%s510 + $0x1b4] sm:$0xf]
        %v667 = vld [vmem:[%s510 + $0x1b8] sm:$0xf]
        %v668 = vld [vmem:[%s510 + $0x1bc] sm:$0xf]
        %v669 = vld [vmem:[%s510 + $0x1c0] sm:$0xf]
        %v670 = vld [vmem:[%s510 + $0x1c4] sm:$0xf]
        %v671 = vld [vmem:[%s510 + $0x1c8] sm:$0xf]
        %v672 = vld [vmem:[%s510 + $0x1cc] sm:$0xf]
        %v673 = vld [vmem:[%s510 + $0x1d0] sm:$0xf]
        %v674 = vld [vmem:[%s510 + $0x1d4] sm:$0xf]
        %v675 = vld [vmem:[%s510 + $0x1d8] sm:$0xf]
        %v676 = vld [vmem:[%s510 + $0x1dc] sm:$0xf]
        %v677 = vld [vmem:[%s510 + $0x1e0] sm:$0xf]
        %v678 = vld [vmem:[%s510 + $0x1e4] sm:$0xf]
        %v679 = vld [vmem:[%s510 + $0x1e8] sm:$0xf]
        %v680 = vld [vmem:[%s510 + $0x1ec] sm:$0xf]
        %v681 = vld [vmem:[%s510 + $0x1f0] sm:$0xf]
        %v682 = vld [vmem:[%s510 + $0x1f4] sm:$0xf]
        %v683 = vld [vmem:[%s510 + $0x1f8] sm:$0xf]
        %v684 = vld [vmem:[%s510 + $0x1fc] sm:$0xf]
        %v685 = vld [vmem:[%s510 + $0x200] sm:$0xf]
        %v686 = vld [vmem:[%s510 + $0x204] sm:$0xf]
        %v687 = vld [vmem:[%s510 + $0x208] sm:$0xf]
        %v688 = vld [vmem:[%s510 + $0x20c] sm:$0xf]
        %v689 = vld [vmem:[%s510 + $0x210] sm:$0xf]
        %v690 = vld [vmem:[%s510 + $0x214] sm:$0xf]
        %v691 = vld [vmem:[%s510 + $0x218] sm:$0xf]
        %v692 = vld [vmem:[%s510 + $0x21c] sm:$0xf]
        %v693 = vld [vmem:[%s510 + $0x220] sm:$0xf]
        %v694 = vld [vmem:[%s510 + $0x224] sm:$0xf]
        %v695 = vld [vmem:[%s510 + $0x228] sm:$0xf]
        %v696 = vld [vmem:[%s510 + $0x22c] sm:$0xf]
        %v697 = vld [vmem:[%s510 + $0x230] sm:$0xf]
        %v698 = vld [vmem:[%s510 + $0x234] sm:$0xf]
        %v699 = vld [vmem:[%s510 + $0x238] sm:$0xf]
        %v700 = vld [vmem:[%s510 + $0x23c] sm:$0xf]
        %v701 = vld [vmem:[%s510 + $0x240] sm:$0xf]
        %v702 = vld [vmem:[%s510 + $0x244] sm:$0xf]
        %v703 = vld [vmem:[%s510 + $0x248] sm:$0xf]
        %v704 = vld [vmem:[%s510 + $0x24c] sm:$0xf]
        %v705 = vld [vmem:[%s510 + $0x250] sm:$0xf]
        %v706 = vld [vmem:[%s510 + $0x254] sm:$0xf]
        %v707 = vld [vmem:[%s510 + $0x258] sm:$0xf]
        %v708 = vld [vmem:[%s510 + $0x25c] sm:$0xf]
        %v709 = vld [vmem:[%s510 + $0x260] sm:$0xf]
        %v710 = vld [vmem:[%s510 + $0x264] sm:$0xf]
        %v711 = vld [vmem:[%s510 + $0x268] sm:$0xf]
        %v712 = vld [vmem:[%s510 + $0x26c] sm:$0xf]
        %v713 = vld [vmem:[%s510 + $0x270] sm:$0xf]
        %v714 = vld [vmem:[%s510 + $0x274] sm:$0xf]
        %v715 = vld [vmem:[%s510 + $0x278] sm:$0xf]
        %v716 = vld [vmem:[%s510 + $0x27c] sm:$0xf]
        %v717 = vld [vmem:[%s510 + $0x280] sm:$0xf]
        %v718 = vld [vmem:[%s510 + $0x284] sm:$0xf]
        %v719 = vld [vmem:[%s510 + $0x288] sm:$0xf]
        %v720 = vld [vmem:[%s510 + $0x28c] sm:$0xf]
        %v721 = vld [vmem:[%s510 + $0x290] sm:$0xf]
        %v722 = vld [vmem:[%s510 + $0x294] sm:$0xf]
        %v723 = vld [vmem:[%s510 + $0x298] sm:$0xf]
        %v724 = vld [vmem:[%s510 + $0x29c] sm:$0xf]
        %v725 = vld [vmem:[%s510 + $0x2a0] sm:$0xf]
        %v726 = vld [vmem:[%s510 + $0x2a4] sm:$0xf]
        %v727 = vld [vmem:[%s510 + $0x2a8] sm:$0xf]
        %v728 = vld [vmem:[%s510 + $0x2ac] sm:$0xf]
        %v729 = vld [vmem:[%s510 + $0x2b0] sm:$0xf]
        %v730 = vld [vmem:[%s510 + $0x2b4] sm:$0xf]
        %v731 = vld [vmem:[%s510 + $0x2b8] sm:$0xf]
        %v732 = vld [vmem:[%s510 + $0x2bc] sm:$0xf]
        %v733 = vld [vmem:[%s510 + $0x2c0] sm:$0xf]
        %v734 = vld [vmem:[%s510 + $0x2c4] sm:$0xf]
        %v735 = vld [vmem:[%s510 + $0x2c8] sm:$0xf]
        %v736 = vld [vmem:[%s510 + $0x2cc] sm:$0xf]
        %v737 = vld [vmem:[%s510 + $0x2d0] sm:$0xf]
        %v738 = vld [vmem:[%s510 + $0x2d4] sm:$0xf]
        %v739 = vld [vmem:[%s510 + $0x2d8] sm:$0xf]
        %v740 = vld [vmem:[%s510 + $0x2dc] sm:$0xf]
        %v741 = vld [vmem:[%s510 + $0x2e0] sm:$0xf]
        %v742 = vld [vmem:[%s510 + $0x2e4] sm:$0xf]
        %v743 = vld [vmem:[%s510 + $0x2e8] sm:$0xf]
        %v744 = vld [vmem:[%s510 + $0x2ec] sm:$0xf]
        %v745 = vld [vmem:[%s510 + $0x2f0] sm:$0xf]
        %v746 = vld [vmem:[%s510 + $0x2f4] sm:$0xf]
        %v747 = vld [vmem:[%s510 + $0x2f8] sm:$0xf]
        %v748 = vld [vmem:[%s510 + $0x2fc] sm:$0xf]
        %v751 = vunpack.c.l.b16 %v555
        %v752 = vunpack.c.l.b16 %v556
        %v753 = vpack.c.b16 %v752, %v751
        %v771 = vunpack.c.l.b16 %v557
        %v772 = vunpack.c.l.b16 %v558
        %v773 = vunpack.c.l.b16 %v559
        %v774 = vunpack.c.l.b16 %v560
        %v775 = vunpack.c.l.b16 %v561
        %v776 = vunpack.c.l.b16 %v562
        %v777 = vunpack.c.l.b16 %v563
        %v778 = vunpack.c.l.b16 %v564
        %v779 = vunpack.c.l.b16 %v565
        %v780 = vunpack.c.l.b16 %v566
        %v781 = vunpack.c.l.b16 %v567
        %v782 = vunpack.c.l.b16 %v568
        %v783 = vunpack.c.l.b16 %v569
        %v784 = vunpack.c.l.b16 %v570
        %v785 = vunpack.c.l.b16 %v571
        %v786 = vunpack.c.l.b16 %v572
        %v787 = vpack.c.b16 %v772, %v771
        %v788 = vpack.c.b16 %v774, %v773
        %v789 = vpack.c.b16 %v776, %v775
        %v790 = vpack.c.b16 %v778, %v777
        %v791 = vpack.c.b16 %v780, %v779
        %v792 = vpack.c.b16 %v782, %v781
        %v793 = vpack.c.b16 %v784, %v783
        %v794 = vpack.c.b16 %v786, %v785
        %803 = vmatpush.bf16.msra.mxu0 %v794
        %804 = vmatpush.bf16.msra.mxu0 %v793
        %805 = vmatpush.bf16.msra.mxu0 %v792
        %806 = vmatpush.bf16.msra.mxu0 %v791
        %807 = vmatpush.bf16.msra.mxu0 %v790
        %808 = vmatpush.bf16.msra.mxu0 %v789
        %809 = vmatpush.bf16.msra.mxu0 %v788
        %810 = vmatpush.bf16.msra.mxu0 %v787
        %811 = vmatmul.bf16.gmra.mxu0 %v753
        %v812 = vpop.f32.mrf.mxu0
        %v813 = vadd.f32 0.0, %v812
        %v814 = vpop.f32.mrf.mxu0
        %v815 = vadd.f32 0.0, %v814
        %816 = vdwg.mxu0
        %v833 = vunpack.c.l.b16 %v573
        %v834 = vunpack.c.l.b16 %v574
        %v835 = vunpack.c.l.b16 %v575
        %v836 = vunpack.c.l.b16 %v576
        %v837 = vunpack.c.l.b16 %v577
        %v838 = vunpack.c.l.b16 %v578
        %v839 = vunpack.c.l.b16 %v579
        %v840 = vunpack.c.l.b16 %v580
        %v841 = vunpack.c.l.b16 %v581
        %v842 = vunpack.c.l.b16 %v582
        %v843 = vunpack.c.l.b16 %v583
        %v844 = vunpack.c.l.b16 %v584
        %v845 = vunpack.c.l.b16 %v585
        %v846 = vunpack.c.l.b16 %v586
        %v847 = vunpack.c.l.b16 %v587
        %v848 = vunpack.c.l.b16 %v588
        %v849 = vpack.c.b16 %v834, %v833
        %v850 = vpack.c.b16 %v836, %v835
        %v851 = vpack.c.b16 %v838, %v837
        %v852 = vpack.c.b16 %v840, %v839
        %v853 = vpack.c.b16 %v842, %v841
        %v854 = vpack.c.b16 %v844, %v843
        %v855 = vpack.c.b16 %v846, %v845
        %v856 = vpack.c.b16 %v848, %v847
        %865 = vmatpush.bf16.msra.mxu0 %v856
        %866 = vmatpush.bf16.msra.mxu0 %v855
        %867 = vmatpush.bf16.msra.mxu0 %v854
        %868 = vmatpush.bf16.msra.mxu0 %v853
        %869 = vmatpush.bf16.msra.mxu0 %v852
        %870 = vmatpush.bf16.msra.mxu0 %v851
        %871 = vmatpush.bf16.msra.mxu0 %v850
        %872 = vmatpush.bf16.msra.mxu0 %v849
        %873 = vmatmul.bf16.gmra.mxu0 %v753
        %v874 = vpop.f32.mrf.mxu0
        %v875 = vadd.f32 0.0, %v874
        %v876 = vpop.f32.mrf.mxu0
        %v877 = vadd.f32 0.0, %v876
        %878 = vdwg.mxu0
        %v895 = vunpack.c.l.b16 %v589
        %v896 = vunpack.c.l.b16 %v590
        %v897 = vunpack.c.l.b16 %v591
        %v898 = vunpack.c.l.b16 %v592
        %v899 = vunpack.c.l.b16 %v593
        %v900 = vunpack.c.l.b16 %v594
        %v901 = vunpack.c.l.b16 %v595
        %v902 = vunpack.c.l.b16 %v596
        %v903 = vunpack.c.l.b16 %v597
        %v904 = vunpack.c.l.b16 %v598
        %v905 = vunpack.c.l.b16 %v599
        %v906 = vunpack.c.l.b16 %v600
        %v907 = vunpack.c.l.b16 %v601
        %v908 = vunpack.c.l.b16 %v602
        %v909 = vunpack.c.l.b16 %v603
        %v910 = vunpack.c.l.b16 %v604
        %v911 = vpack.c.b16 %v896, %v895
        %v912 = vpack.c.b16 %v898, %v897
        %v913 = vpack.c.b16 %v900, %v899
        %v914 = vpack.c.b16 %v902, %v901
        %v915 = vpack.c.b16 %v904, %v903
        %v916 = vpack.c.b16 %v906, %v905
        %v917 = vpack.c.b16 %v908, %v907
        %v918 = vpack.c.b16 %v910, %v909
        %927 = vmatpush.bf16.msra.mxu0 %v918
        %928 = vmatpush.bf16.msra.mxu0 %v917
        %929 = vmatpush.bf16.msra.mxu0 %v916
        %930 = vmatpush.bf16.msra.mxu0 %v915
        %931 = vmatpush.bf16.msra.mxu0 %v914
        %932 = vmatpush.bf16.msra.mxu0 %v913
        %933 = vmatpush.bf16.msra.mxu0 %v912
        %934 = vmatpush.bf16.msra.mxu0 %v911
        %935 = vmatmul.bf16.gmra.mxu0 %v753
        %v936 = vpop.f32.mrf.mxu0
        %v937 = vadd.f32 0.0, %v936
        %v938 = vpop.f32.mrf.mxu0
        %v939 = vadd.f32 0.0, %v938
        %940 = vdwg.mxu0
        %v957 = vunpack.c.l.b16 %v605
        %v958 = vunpack.c.l.b16 %v606
        %v959 = vunpack.c.l.b16 %v607
        %v960 = vunpack.c.l.b16 %v608
        %v961 = vunpack.c.l.b16 %v609
        %v962 = vunpack.c.l.b16 %v610
        %v963 = vunpack.c.l.b16 %v611
        %v964 = vunpack.c.l.b16 %v612
        %v965 = vunpack.c.l.b16 %v613
        %v966 = vunpack.c.l.b16 %v614
        %v967 = vunpack.c.l.b16 %v615
        %v968 = vunpack.c.l.b16 %v616
        %v969 = vunpack.c.l.b16 %v617
        %v970 = vunpack.c.l.b16 %v618
        %v971 = vunpack.c.l.b16 %v619
        %v972 = vunpack.c.l.b16 %v620
        %v973 = vpack.c.b16 %v958, %v957
        %v974 = vpack.c.b16 %v960, %v959
        %v975 = vpack.c.b16 %v962, %v961
        %v976 = vpack.c.b16 %v964, %v963
        %v977 = vpack.c.b16 %v966, %v965
        %v978 = vpack.c.b16 %v968, %v967
        %v979 = vpack.c.b16 %v970, %v969
        %v980 = vpack.c.b16 %v972, %v971
        %989 = vmatpush.bf16.msra.mxu0 %v980
        %990 = vmatpush.bf16.msra.mxu0 %v979
        %991 = vmatpush.bf16.msra.mxu0 %v978
        %992 = vmatpush.bf16.msra.mxu0 %v977
        %993 = vmatpush.bf16.msra.mxu0 %v976
        %994 = vmatpush.bf16.msra.mxu0 %v975
        %995 = vmatpush.bf16.msra.mxu0 %v974
        %996 = vmatpush.bf16.msra.mxu0 %v973
        %997 = vmatmul.bf16.gmra.mxu0 %v753
        %v998 = vpop.f32.mrf.mxu0
        %v999 = vadd.f32 0.0, %v998
        %v1000 = vpop.f32.mrf.mxu0
        %v1001 = vadd.f32 0.0, %v1000
        %1002 = vdwg.mxu0
        %v1019 = vunpack.c.l.b16 %v621
        %v1020 = vunpack.c.l.b16 %v622
        %v1021 = vunpack.c.l.b16 %v623
        %v1022 = vunpack.c.l.b16 %v624
        %v1023 = vunpack.c.l.b16 %v625
        %v1024 = vunpack.c.l.b16 %v626
        %v1025 = vunpack.c.l.b16 %v627
        %v1026 = vunpack.c.l.b16 %v628
        %v1027 = vunpack.c.l.b16 %v629
        %v1028 = vunpack.c.l.b16 %v630
        %v1029 = vunpack.c.l.b16 %v631
        %v1030 = vunpack.c.l.b16 %v632
        %v1031 = vunpack.c.l.b16 %v633
        %v1032 = vunpack.c.l.b16 %v634
        %v1033 = vunpack.c.l.b16 %v635
        %v1034 = vunpack.c.l.b16 %v636
        %v1035 = vpack.c.b16 %v1020, %v1019
        %v1036 = vpack.c.b16 %v1022, %v1021
        %v1037 = vpack.c.b16 %v1024, %v1023
        %v1038 = vpack.c.b16 %v1026, %v1025
        %v1039 = vpack.c.b16 %v1028, %v1027
        %v1040 = vpack.c.b16 %v1030, %v1029
        %v1041 = vpack.c.b16 %v1032, %v1031
        %v1042 = vpack.c.b16 %v1034, %v1033
        %1051 = vmatpush.bf16.msra.mxu0 %v1042
        %1052 = vmatpush.bf16.msra.mxu0 %v1041
        %1053 = vmatpush.bf16.msra.mxu0 %v1040
        %1054 = vmatpush.bf16.msra.mxu0 %v1039
        %1055 = vmatpush.bf16.msra.mxu0 %v1038
        %1056 = vmatpush.bf16.msra.mxu0 %v1037
        %1057 = vmatpush.bf16.msra.mxu0 %v1036
        %1058 = vmatpush.bf16.msra.mxu0 %v1035
        %1059 = vmatmul.bf16.gmra.mxu0 %v753
        %v1060 = vpop.f32.mrf.mxu0
        %v1061 = vadd.f32 0.0, %v1060
        %v1062 = vpop.f32.mrf.mxu0
        %v1063 = vadd.f32 0.0, %v1062
        %1064 = vdwg.mxu0
        %v1081 = vunpack.c.l.b16 %v637
        %v1082 = vunpack.c.l.b16 %v638
        %v1083 = vunpack.c.l.b16 %v639
        %v1084 = vunpack.c.l.b16 %v640
        %v1085 = vunpack.c.l.b16 %v641
        %v1086 = vunpack.c.l.b16 %v642
        %v1087 = vunpack.c.l.b16 %v643
        %v1088 = vunpack.c.l.b16 %v644
        %v1089 = vunpack.c.l.b16 %v645
        %v1090 = vunpack.c.l.b16 %v646
        %v1091 = vunpack.c.l.b16 %v647
        %v1092 = vunpack.c.l.b16 %v648
        %v1093 = vunpack.c.l.b16 %v649
        %v1094 = vunpack.c.l.b16 %v650
        %v1095 = vunpack.c.l.b16 %v651
        %v1096 = vunpack.c.l.b16 %v652
        %v1097 = vpack.c.b16 %v1082, %v1081
        %v1098 = vpack.c.b16 %v1084, %v1083
        %v1099 = vpack.c.b16 %v1086, %v1085
        %v1100 = vpack.c.b16 %v1088, %v1087
        %v1101 = vpack.c.b16 %v1090, %v1089
        %v1102 = vpack.c.b16 %v1092, %v1091
        %v1103 = vpack.c.b16 %v1094, %v1093
        %v1104 = vpack.c.b16 %v1096, %v1095
        %1113 = vmatpush.bf16.msra.mxu0 %v1104
        %1114 = vmatpush.bf16.msra.mxu0 %v1103
        %1115 = vmatpush.bf16.msra.mxu0 %v1102
        %1116 = vmatpush.bf16.msra.mxu0 %v1101
        %1117 = vmatpush.bf16.msra.mxu0 %v1100
        %1118 = vmatpush.bf16.msra.mxu0 %v1099
        %1119 = vmatpush.bf16.msra.mxu0 %v1098
        %1120 = vmatpush.bf16.msra.mxu0 %v1097
        %1121 = vmatmul.bf16.gmra.mxu0 %v753
        %v1122 = vpop.f32.mrf.mxu0
        %v1123 = vadd.f32 0.0, %v1122
        %v1124 = vpop.f32.mrf.mxu0
        %v1125 = vadd.f32 0.0, %v1124
        %1126 = vdwg.mxu0
        %v1143 = vunpack.c.l.b16 %v653
        %v1144 = vunpack.c.l.b16 %v654
        %v1145 = vunpack.c.l.b16 %v655
        %v1146 = vunpack.c.l.b16 %v656
        %v1147 = vunpack.c.l.b16 %v657
        %v1148 = vunpack.c.l.b16 %v658
        %v1149 = vunpack.c.l.b16 %v659
        %v1150 = vunpack.c.l.b16 %v660
        %v1151 = vunpack.c.l.b16 %v661
        %v1152 = vunpack.c.l.b16 %v662
        %v1153 = vunpack.c.l.b16 %v663
        %v1154 = vunpack.c.l.b16 %v664
        %v1155 = vunpack.c.l.b16 %v665
        %v1156 = vunpack.c.l.b16 %v666
        %v1157 = vunpack.c.l.b16 %v667
        %v1158 = vunpack.c.l.b16 %v668
        %v1159 = vpack.c.b16 %v1144, %v1143
        %v1160 = vpack.c.b16 %v1146, %v1145
        %v1161 = vpack.c.b16 %v1148, %v1147
        %v1162 = vpack.c.b16 %v1150, %v1149
        %v1163 = vpack.c.b16 %v1152, %v1151
        %v1164 = vpack.c.b16 %v1154, %v1153
        %v1165 = vpack.c.b16 %v1156, %v1155
        %v1166 = vpack.c.b16 %v1158, %v1157
        %1175 = vmatpush.bf16.msra.mxu0 %v1166
        %1176 = vmatpush.bf16.msra.mxu0 %v1165
        %1177 = vmatpush.bf16.msra.mxu0 %v1164
        %1178 = vmatpush.bf16.msra.mxu0 %v1163
        %1179 = vmatpush.bf16.msra.mxu0 %v1162
        %1180 = vmatpush.bf16.msra.mxu0 %v1161
        %1181 = vmatpush.bf16.msra.mxu0 %v1160
        %1182 = vmatpush.bf16.msra.mxu0 %v1159
        %1183 = vmatmul.bf16.gmra.mxu0 %v753
        %v1184 = vpop.f32.mrf.mxu0
        %v1185 = vadd.f32 0.0, %v1184
        %v1186 = vpop.f32.mrf.mxu0
        %v1187 = vadd.f32 0.0, %v1186
        %1188 = vdwg.mxu0
        %v1205 = vunpack.c.l.b16 %v669
        %v1206 = vunpack.c.l.b16 %v670
        %v1207 = vunpack.c.l.b16 %v671
        %v1208 = vunpack.c.l.b16 %v672
        %v1209 = vunpack.c.l.b16 %v673
        %v1210 = vunpack.c.l.b16 %v674
        %v1211 = vunpack.c.l.b16 %v675
        %v1212 = vunpack.c.l.b16 %v676
        %v1213 = vunpack.c.l.b16 %v677
        %v1214 = vunpack.c.l.b16 %v678
        %v1215 = vunpack.c.l.b16 %v679
        %v1216 = vunpack.c.l.b16 %v680
        %v1217 = vunpack.c.l.b16 %v681
        %v1218 = vunpack.c.l.b16 %v682
        %v1219 = vunpack.c.l.b16 %v683
        %v1220 = vunpack.c.l.b16 %v684
        %v1221 = vpack.c.b16 %v1206, %v1205
        %v1222 = vpack.c.b16 %v1208, %v1207
        %v1223 = vpack.c.b16 %v1210, %v1209
        %v1224 = vpack.c.b16 %v1212, %v1211
        %v1225 = vpack.c.b16 %v1214, %v1213
        %v1226 = vpack.c.b16 %v1216, %v1215
        %v1227 = vpack.c.b16 %v1218, %v1217
        %v1228 = vpack.c.b16 %v1220, %v1219
        %1237 = vmatpush.bf16.msra.mxu0 %v1228
        %1238 = vmatpush.bf16.msra.mxu0 %v1227
        %1239 = vmatpush.bf16.msra.mxu0 %v1226
        %1240 = vmatpush.bf16.msra.mxu0 %v1225
        %1241 = vmatpush.bf16.msra.mxu0 %v1224
        %1242 = vmatpush.bf16.msra.mxu0 %v1223
        %1243 = vmatpush.bf16.msra.mxu0 %v1222
        %1244 = vmatpush.bf16.msra.mxu0 %v1221
        %1245 = vmatmul.bf16.gmra.mxu0 %v753
        %v1246 = vpop.f32.mrf.mxu0
        %v1247 = vadd.f32 0.0, %v1246
        %v1248 = vpop.f32.mrf.mxu0
        %v1249 = vadd.f32 0.0, %v1248
        %1250 = vdwg.mxu0
        %v1267 = vunpack.c.l.b16 %v685
        %v1268 = vunpack.c.l.b16 %v686
        %v1269 = vunpack.c.l.b16 %v687
        %v1270 = vunpack.c.l.b16 %v688
        %v1271 = vunpack.c.l.b16 %v689
        %v1272 = vunpack.c.l.b16 %v690
        %v1273 = vunpack.c.l.b16 %v691
        %v1274 = vunpack.c.l.b16 %v692
        %v1275 = vunpack.c.l.b16 %v693
        %v1276 = vunpack.c.l.b16 %v694
        %v1277 = vunpack.c.l.b16 %v695
        %v1278 = vunpack.c.l.b16 %v696
        %v1279 = vunpack.c.l.b16 %v697
        %v1280 = vunpack.c.l.b16 %v698
        %v1281 = vunpack.c.l.b16 %v699
        %v1282 = vunpack.c.l.b16 %v700
        %v1283 = vpack.c.b16 %v1268, %v1267
        %v1284 = vpack.c.b16 %v1270, %v1269
        %v1285 = vpack.c.b16 %v1272, %v1271
        %v1286 = vpack.c.b16 %v1274, %v1273
        %v1287 = vpack.c.b16 %v1276, %v1275
        %v1288 = vpack.c.b16 %v1278, %v1277
        %v1289 = vpack.c.b16 %v1280, %v1279
        %v1290 = vpack.c.b16 %v1282, %v1281
        %1299 = vmatpush.bf16.msra.mxu0 %v1290
        %1300 = vmatpush.bf16.msra.mxu0 %v1289
        %1301 = vmatpush.bf16.msra.mxu0 %v1288
        %1302 = vmatpush.bf16.msra.mxu0 %v1287
        %1303 = vmatpush.bf16.msra.mxu0 %v1286
        %1304 = vmatpush.bf16.msra.mxu0 %v1285
        %1305 = vmatpush.bf16.msra.mxu0 %v1284
        %1306 = vmatpush.bf16.msra.mxu0 %v1283
        %1307 = vmatmul.bf16.gmra.mxu0 %v753
        %v1308 = vpop.f32.mrf.mxu0
        %v1309 = vadd.f32 0.0, %v1308
        %v1310 = vpop.f32.mrf.mxu0
        %v1311 = vadd.f32 0.0, %v1310
        %1312 = vdwg.mxu0
        %v1329 = vunpack.c.l.b16 %v701
        %v1330 = vunpack.c.l.b16 %v702
        %v1331 = vunpack.c.l.b16 %v703
        %v1332 = vunpack.c.l.b16 %v704
        %v1333 = vunpack.c.l.b16 %v705
        %v1334 = vunpack.c.l.b16 %v706
        %v1335 = vunpack.c.l.b16 %v707
        %v1336 = vunpack.c.l.b16 %v708
        %v1337 = vunpack.c.l.b16 %v709
        %v1338 = vunpack.c.l.b16 %v710
        %v1339 = vunpack.c.l.b16 %v711
        %v1340 = vunpack.c.l.b16 %v712
        %v1341 = vunpack.c.l.b16 %v713
        %v1342 = vunpack.c.l.b16 %v714
        %v1343 = vunpack.c.l.b16 %v715
        %v1344 = vunpack.c.l.b16 %v716
        %v1345 = vpack.c.b16 %v1330, %v1329
        %v1346 = vpack.c.b16 %v1332, %v1331
        %v1347 = vpack.c.b16 %v1334, %v1333
        %v1348 = vpack.c.b16 %v1336, %v1335
        %v1349 = vpack.c.b16 %v1338, %v1337
        %v1350 = vpack.c.b16 %v1340, %v1339
        %v1351 = vpack.c.b16 %v1342, %v1341
        %v1352 = vpack.c.b16 %v1344, %v1343
        %1361 = vmatpush.bf16.msra.mxu0 %v1352
        %1362 = vmatpush.bf16.msra.mxu0 %v1351
        %1363 = vmatpush.bf16.msra.mxu0 %v1350
        %1364 = vmatpush.bf16.msra.mxu0 %v1349
        %1365 = vmatpush.bf16.msra.mxu0 %v1348
        %1366 = vmatpush.bf16.msra.mxu0 %v1347
        %1367 = vmatpush.bf16.msra.mxu0 %v1346
        %1368 = vmatpush.bf16.msra.mxu0 %v1345
        %1369 = vmatmul.bf16.gmra.mxu0 %v753
        %v1370 = vpop.f32.mrf.mxu0
        %v1371 = vadd.f32 0.0, %v1370
        %v1372 = vpop.f32.mrf.mxu0
        %v1373 = vadd.f32 0.0, %v1372
        %1374 = vdwg.mxu0
        %v1391 = vunpack.c.l.b16 %v717
        %v1392 = vunpack.c.l.b16 %v718
        %v1393 = vunpack.c.l.b16 %v719
        %v1394 = vunpack.c.l.b16 %v720
        %v1395 = vunpack.c.l.b16 %v721
        %v1396 = vunpack.c.l.b16 %v722
        %v1397 = vunpack.c.l.b16 %v723
        %v1398 = vunpack.c.l.b16 %v724
        %v1399 = vunpack.c.l.b16 %v725
        %v1400 = vunpack.c.l.b16 %v726
        %v1401 = vunpack.c.l.b16 %v727
        %v1402 = vunpack.c.l.b16 %v728
        %v1403 = vunpack.c.l.b16 %v729
        %v1404 = vunpack.c.l.b16 %v730
        %v1405 = vunpack.c.l.b16 %v731
        %v1406 = vunpack.c.l.b16 %v732
        %v1407 = vpack.c.b16 %v1392, %v1391
        %v1408 = vpack.c.b16 %v1394, %v1393
        %v1409 = vpack.c.b16 %v1396, %v1395
        %v1410 = vpack.c.b16 %v1398, %v1397
        %v1411 = vpack.c.b16 %v1400, %v1399
        %v1412 = vpack.c.b16 %v1402, %v1401
        %v1413 = vpack.c.b16 %v1404, %v1403
        %v1414 = vpack.c.b16 %v1406, %v1405
        %1423 = vmatpush.bf16.msra.mxu0 %v1414
        %1424 = vmatpush.bf16.msra.mxu0 %v1413
        %1425 = vmatpush.bf16.msra.mxu0 %v1412
        %1426 = vmatpush.bf16.msra.mxu0 %v1411
        %1427 = vmatpush.bf16.msra.mxu0 %v1410
        %1428 = vmatpush.bf16.msra.mxu0 %v1409
        %1429 = vmatpush.bf16.msra.mxu0 %v1408
        %1430 = vmatpush.bf16.msra.mxu0 %v1407
        %1431 = vmatmul.bf16.gmra.mxu0 %v753
        %v1432 = vpop.f32.mrf.mxu0
        %v1433 = vadd.f32 0.0, %v1432
        %v1434 = vpop.f32.mrf.mxu0
        %v1435 = vadd.f32 0.0, %v1434
        %1436 = vdwg.mxu0
        %v1453 = vunpack.c.l.b16 %v733
        %v1454 = vunpack.c.l.b16 %v734
        %v1455 = vunpack.c.l.b16 %v735
        %v1456 = vunpack.c.l.b16 %v736
        %v1457 = vunpack.c.l.b16 %v737
        %v1458 = vunpack.c.l.b16 %v738
        %v1459 = vunpack.c.l.b16 %v739
        %v1460 = vunpack.c.l.b16 %v740
        %v1461 = vunpack.c.l.b16 %v741
        %v1462 = vunpack.c.l.b16 %v742
        %v1463 = vunpack.c.l.b16 %v743
        %v1464 = vunpack.c.l.b16 %v744
        %v1465 = vunpack.c.l.b16 %v745
        %v1466 = vunpack.c.l.b16 %v746
        %v1467 = vunpack.c.l.b16 %v747
        %v1468 = vunpack.c.l.b16 %v748
        %v1469 = vpack.c.b16 %v1454, %v1453
        %v1470 = vpack.c.b16 %v1456, %v1455
        %v1471 = vpack.c.b16 %v1458, %v1457
        %v1472 = vpack.c.b16 %v1460, %v1459
        %v1473 = vpack.c.b16 %v1462, %v1461
        %v1474 = vpack.c.b16 %v1464, %v1463
        %v1475 = vpack.c.b16 %v1466, %v1465
        %v1476 = vpack.c.b16 %v1468, %v1467
        %1485 = vmatpush.bf16.msra.mxu0 %v1476
        %1486 = vmatpush.bf16.msra.mxu0 %v1475
        %1487 = vmatpush.bf16.msra.mxu0 %v1474
        %1488 = vmatpush.bf16.msra.mxu0 %v1473
        %1489 = vmatpush.bf16.msra.mxu0 %v1472
        %1490 = vmatpush.bf16.msra.mxu0 %v1471
        %1491 = vmatpush.bf16.msra.mxu0 %v1470
        %1492 = vmatpush.bf16.msra.mxu0 %v1469
        %1493 = vmatmul.bf16.gmra.mxu0 %v753
        %v1494 = vpop.f32.mrf.mxu0
        %v1495 = vadd.f32 0.0, %v1494
        %v1496 = vpop.f32.mrf.mxu0
        %v1497 = vadd.f32 0.0, %v1496
        %1498 = vdwg.mxu0
        %v1499 = vpack.c.bf16 %v813, %v813
        %v1500 = vpack.c.bf16 %v815, %v815
        %v1501 = vpack.c.bf16 %v875, %v875
        %v1502 = vpack.c.bf16 %v877, %v877
        %v1503 = vpack.c.bf16 %v937, %v937
        %v1504 = vpack.c.bf16 %v939, %v939
        %v1505 = vpack.c.bf16 %v999, %v999
        %v1506 = vpack.c.bf16 %v1001, %v1001
        %v1507 = vpack.c.bf16 %v1061, %v1061
        %v1508 = vpack.c.bf16 %v1063, %v1063
        %v1509 = vpack.c.bf16 %v1123, %v1123
        %v1510 = vpack.c.bf16 %v1125, %v1125
        %v1511 = vpack.c.bf16 %v1185, %v1185
        %v1512 = vpack.c.bf16 %v1187, %v1187
        %v1513 = vpack.c.bf16 %v1247, %v1247
        %v1514 = vpack.c.bf16 %v1249, %v1249
        %v1515 = vpack.c.bf16 %v1309, %v1309
        %v1516 = vpack.c.bf16 %v1311, %v1311
        %v1517 = vpack.c.bf16 %v1371, %v1371
        %v1518 = vpack.c.bf16 %v1373, %v1373
        %v1519 = vpack.c.bf16 %v1433, %v1433
        %v1520 = vpack.c.bf16 %v1435, %v1435
        %v1521 = vpack.c.bf16 %v1495, %v1495
        %v1522 = vpack.c.bf16 %v1497, %v1497
        %v1523 = vld [vmem:[%s1] sm:$0xff]
        %v1524 = vld [vmem:[%s1 + $0x8] sm:$0xff]
        %v1527 = vunpack.c.l.b16 %v1499
        %v1528 = vunpack.c.l.b16 %v1500
        %v1529 = vpack.c.b16 %v1528, %v1527
        %v1532 = vunpack.c.l.b16 %v1507
        %v1533 = vunpack.c.l.b16 %v1508
        %v1534 = vpack.c.b16 %v1533, %v1532
        %vm1535 = vcmask 64512
        %v1537 = vsel %vm1535, %v1529, 0
        %v1540 = vsel %vm1535, %v1534, 0
        %1542 = vmatpush.bf16.xpose.msra.mxu0 0
        %1543 = vmatpush.bf16.xpose.msra.mxu0 0
        %1544 = vmatpush.bf16.xpose.msra.mxu0 0
        %1545 = vmatpush.bf16.xpose.msra.mxu0 0
        %1546 = vmatpush.bf16.xpose.msra.mxu0 0
        %1547 = vmatpush.bf16.xpose.msra.mxu0 0
        %1548 = vmatpush.bf16.xpose.msra.mxu0 0
        %1549 = vmatpush.bf16.xpose.msra.mxu0 %v1540
        %1550 = vmatmul.bf16.gmra.mxu0 %v1537
        %v1551 = vpop.f32.mrf.mxu0
        %v1552 = vadd.f32 %v1523, %v1551
        %v1553 = vpop.f32.mrf.mxu0
        %v1554 = vadd.f32 %v1524, %v1553
        %1555 = vdwg.mxu0
        %v1558 = vunpack.c.l.b16 %v1501
        %v1559 = vunpack.c.l.b16 %v1502
        %v1560 = vpack.c.b16 %v1559, %v1558
        %v1563 = vunpack.c.l.b16 %v1509
        %v1564 = vunpack.c.l.b16 %v1510
        %v1565 = vpack.c.b16 %v1564, %v1563
        %v1567 = vsel %vm1535, %v1560, 0
        %v1570 = vsel %vm1535, %v1565, 0
        %1572 = vmatpush.bf16.xpose.msra.mxu0 0
        %1573 = vmatpush.bf16.xpose.msra.mxu0 0
        %1574 = vmatpush.bf16.xpose.msra.mxu0 0
        %1575 = vmatpush.bf16.xpose.msra.mxu0 0
        %1576 = vmatpush.bf16.xpose.msra.mxu0 0
        %1577 = vmatpush.bf16.xpose.msra.mxu0 0
        %1578 = vmatpush.bf16.xpose.msra.mxu0 0
        %1579 = vmatpush.bf16.xpose.msra.mxu0 %v1570
        %1580 = vmatmul.bf16.gmra.mxu0 %v1567
        %v1581 = vpop.f32.mrf.mxu0
        %v1582 = vadd.f32 %v1523, %v1581
        %v1583 = vpop.f32.mrf.mxu0
        %v1584 = vadd.f32 %v1524, %v1583
        %1585 = vdwg.mxu0
        %v1588 = vunpack.c.l.b16 %v1503
        %v1589 = vunpack.c.l.b16 %v1504
        %v1590 = vpack.c.b16 %v1589, %v1588
        %v1593 = vunpack.c.l.b16 %v1511
        %v1594 = vunpack.c.l.b16 %v1512
        %v1595 = vpack.c.b16 %v1594, %v1593
        %v1597 = vsel %vm1535, %v1590, 0
        %v1600 = vsel %vm1535, %v1595, 0
        %1602 = vmatpush.bf16.xpose.msra.mxu0 0
        %1603 = vmatpush.bf16.xpose.msra.mxu0 0
        %1604 = vmatpush.bf16.xpose.msra.mxu0 0
        %1605 = vmatpush.bf16.xpose.msra.mxu0 0
        %1606 = vmatpush.bf16.xpose.msra.mxu0 0
        %1607 = vmatpush.bf16.xpose.msra.mxu0 0
        %1608 = vmatpush.bf16.xpose.msra.mxu0 0
        %1609 = vmatpush.bf16.xpose.msra.mxu0 %v1600
        %1610 = vmatmul.bf16.gmra.mxu0 %v1597
        %v1611 = vpop.f32.mrf.mxu0
        %v1612 = vadd.f32 %v1523, %v1611
        %v1613 = vpop.f32.mrf.mxu0
        %v1614 = vadd.f32 %v1524, %v1613
        %1615 = vdwg.mxu0
        %v1618 = vunpack.c.l.b16 %v1505
        %v1619 = vunpack.c.l.b16 %v1506
        %v1620 = vpack.c.b16 %v1619, %v1618
        %v1623 = vunpack.c.l.b16 %v1513
        %v1624 = vunpack.c.l.b16 %v1514
        %v1625 = vpack.c.b16 %v1624, %v1623
        %v1627 = vsel %vm1535, %v1620, 0
        %v1630 = vsel %vm1535, %v1625, 0
        %1632 = vmatpush.bf16.xpose.msra.mxu0 0
        %1633 = vmatpush.bf16.xpose.msra.mxu0 0
        %1634 = vmatpush.bf16.xpose.msra.mxu0 0
        %1635 = vmatpush.bf16.xpose.msra.mxu0 0
        %1636 = vmatpush.bf16.xpose.msra.mxu0 0
        %1637 = vmatpush.bf16.xpose.msra.mxu0 0
        %1638 = vmatpush.bf16.xpose.msra.mxu0 0
        %1639 = vmatpush.bf16.xpose.msra.mxu0 %v1630
        %1640 = vmatmul.bf16.gmra.mxu0 %v1627
        %v1641 = vpop.f32.mrf.mxu0
        %v1642 = vadd.f32 %v1523, %v1641
        %v1643 = vpop.f32.mrf.mxu0
        %v1644 = vadd.f32 %v1524, %v1643
        %1645 = vdwg.mxu0
        %vm1646 = vcmask 130048
        %v1647 = vsel %vm1646, %v1552, -inf
        %1648 = vmax.xlane.f32.xlu0 %v1647
        %v1649 = vpop.xlane.xlu0 %1648
        %v1650 = vsel %vm1646, %v1554, -inf
        %1651 = vmax.xlane.f32.xlu0 %v1650
        %v1652 = vpop.xlane.xlu0 %1651
        %v1653 = vsel %vm1646, %v1582, -inf
        %1654 = vmax.xlane.f32.xlu0 %v1653
        %v1655 = vpop.xlane.xlu0 %1654
        %v1656 = vsel %vm1646, %v1584, -inf
        %1657 = vmax.xlane.f32.xlu0 %v1656
        %v1658 = vpop.xlane.xlu0 %1657
        %v1659 = vsel %vm1646, %v1612, -inf
        %1660 = vmax.xlane.f32.xlu0 %v1659
        %v1661 = vpop.xlane.xlu0 %1660
        %v1662 = vsel %vm1646, %v1614, -inf
        %1663 = vmax.xlane.f32.xlu0 %v1662
        %v1664 = vpop.xlane.xlu0 %1663
        %v1665 = vsel %vm1646, %v1642, -inf
        %1666 = vmax.xlane.f32.xlu0 %v1665
        %v1667 = vpop.xlane.xlu0 %1666
        %v1668 = vsel %vm1646, %v1644, -inf
        %1669 = vmax.xlane.f32.xlu0 %v1668
        %v1670 = vpop.xlane.xlu0 %1669
        %v1671 = vsub.f32 %v1552, %v1649
        %v1672 = vsub.f32 %v1554, %v1652
        %v1673 = vsub.f32 %v1582, %v1655
        %v1674 = vsub.f32 %v1584, %v1658
        %v1675 = vsub.f32 %v1612, %v1661
        %v1676 = vsub.f32 %v1614, %v1664
        %v1677 = vsub.f32 %v1642, %v1667
        %v1678 = vsub.f32 %v1644, %v1670
        %v1679 = vmul.f32 %v1671, 1.442695
        %v1680 = vpow.pop %v1679
        %v1681 = vmul.f32 %v1672, 1.442695
        %v1682 = vpow.pop %v1681
        %v1683 = vmul.f32 %v1673, 1.442695
        %v1684 = vpow.pop %v1683
        %v1685 = vmul.f32 %v1674, 1.442695
        %v1686 = vpow.pop %v1685
        %v1687 = vmul.f32 %v1675, 1.442695
        %v1688 = vpow.pop %v1687
        %v1689 = vmul.f32 %v1676, 1.442695
        %v1690 = vpow.pop %v1689
        %v1691 = vmul.f32 %v1677, 1.442695
        %v1692 = vpow.pop %v1691
        %v1693 = vmul.f32 %v1678, 1.442695
        %v1694 = vpow.pop %v1693
        %v1695 = vsel %vm1646, %v1680, 0.0
        %1696 = vadd.xlane.f32.xlu0 %v1695
        %v1697 = vpop.xlane.xlu0 %1696
        %v1698 = vsel %vm1646, %v1682, 0.0
        %1699 = vadd.xlane.f32.xlu0 %v1698
        %v1700 = vpop.xlane.xlu0 %1699
        %v1701 = vsel %vm1646, %v1684, 0.0
        %1702 = vadd.xlane.f32.xlu0 %v1701
        %v1703 = vpop.xlane.xlu0 %1702
        %v1704 = vsel %vm1646, %v1686, 0.0
        %1705 = vadd.xlane.f32.xlu0 %v1704
        %v1706 = vpop.xlane.xlu0 %1705
        %v1707 = vsel %vm1646, %v1688, 0.0
        %1708 = vadd.xlane.f32.xlu0 %v1707
        %v1709 = vpop.xlane.xlu0 %1708
        %v1710 = vsel %vm1646, %v1690, 0.0
        %1711 = vadd.xlane.f32.xlu0 %v1710
        %v1712 = vpop.xlane.xlu0 %1711
        %v1713 = vsel %vm1646, %v1692, 0.0
        %1714 = vadd.xlane.f32.xlu0 %v1713
        %v1715 = vpop.xlane.xlu0 %1714
        %v1716 = vsel %vm1646, %v1694, 0.0
        %1717 = vadd.xlane.f32.xlu0 %v1716
        %v1718 = vpop.xlane.xlu0 %1717
        %v1719 = vrcp.pop %v1697
        %v1720 = vrcp.pop %v1700
        %v1721 = vrcp.pop %v1703
        %v1722 = vrcp.pop %v1706
        %v1723 = vrcp.pop %v1709
        %v1724 = vrcp.pop %v1712
        %v1725 = vrcp.pop %v1715
        %v1726 = vrcp.pop %v1718
        %v1727 = vmul.f32 %v1680, %v1719
        %v1728 = vmul.f32 %v1682, %v1720
        %v1729 = vmul.f32 %v1684, %v1721
        %v1730 = vmul.f32 %v1686, %v1722
        %v1731 = vmul.f32 %v1688, %v1723
        %v1732 = vmul.f32 %v1690, %v1724
        %v1733 = vmul.f32 %v1692, %v1725
        %v1734 = vmul.f32 %v1694, %v1726
        %v1735 = vpack.c.bf16 %v1727, %v1727
        %v1736 = vpack.c.bf16 %v1728, %v1728
        %v1737 = vpack.c.bf16 %v1729, %v1729
        %v1738 = vpack.c.bf16 %v1730, %v1730
        %v1739 = vpack.c.bf16 %v1731, %v1731
        %v1740 = vpack.c.bf16 %v1732, %v1732
        %v1741 = vpack.c.bf16 %v1733, %v1733
        %v1742 = vpack.c.bf16 %v1734, %v1734
        %v1745 = vunpack.c.l.b16 %v1735
        %v1746 = vunpack.c.l.b16 %v1736
        %v1747 = vpack.c.b16 %v1746, %v1745
        %v1750 = vunpack.c.l.b16 %v1515
        %v1751 = vunpack.c.l.b16 %v1516
        %v1752 = vpack.c.b16 %v1751, %v1750
        %v1755 = vsel %vm1646, %v1747, 0
        %1757 = vmatpush.bf16.msra.mxu0 0
        %1758 = vmatpush.bf16.msra.mxu0 0
        %1759 = vmatpush.bf16.msra.mxu0 0
        %1760 = vmatpush.bf16.msra.mxu0 0
        %1761 = vmatpush.bf16.msra.mxu0 0
        %1762 = vmatpush.bf16.msra.mxu0 0
        %1763 = vmatpush.bf16.msra.mxu0 0
        %1764 = vmatpush.bf16.msra.mxu0 %v1752
        %1765 = vmatmul.bf16.gmra.mxu0 %v1755
        %v1766 = vpop.f32.mrf.mxu0
        %v1767 = vadd.f32 0.0, %v1766
        %v1768 = vpop.f32.mrf.mxu0
        %v1769 = vadd.f32 0.0, %v1768
        %1770 = vdwg.mxu0
        %v1773 = vunpack.c.l.b16 %v1737
        %v1774 = vunpack.c.l.b16 %v1738
        %v1775 = vpack.c.b16 %v1774, %v1773
        %v1778 = vunpack.c.l.b16 %v1517
        %v1779 = vunpack.c.l.b16 %v1518
        %v1780 = vpack.c.b16 %v1779, %v1778
        %v1783 = vsel %vm1646, %v1775, 0
        %1785 = vmatpush.bf16.msra.mxu0 0
        %1786 = vmatpush.bf16.msra.mxu0 0
        %1787 = vmatpush.bf16.msra.mxu0 0
        %1788 = vmatpush.bf16.msra.mxu0 0
        %1789 = vmatpush.bf16.msra.mxu0 0
        %1790 = vmatpush.bf16.msra.mxu0 0
        %1791 = vmatpush.bf16.msra.mxu0 0
        %1792 = vmatpush.bf16.msra.mxu0 %v1780
        %1793 = vmatmul.bf16.gmra.mxu0 %v1783
        %v1794 = vpop.f32.mrf.mxu0
        %v1795 = vadd.f32 0.0, %v1794
        %v1796 = vpop.f32.mrf.mxu0
        %v1797 = vadd.f32 0.0, %v1796
        %1798 = vdwg.mxu0
        %v1801 = vunpack.c.l.b16 %v1739
        %v1802 = vunpack.c.l.b16 %v1740
        %v1803 = vpack.c.b16 %v1802, %v1801
        %v1806 = vunpack.c.l.b16 %v1519
        %v1807 = vunpack.c.l.b16 %v1520
        %v1808 = vpack.c.b16 %v1807, %v1806
        %v1811 = vsel %vm1646, %v1803, 0
        %1813 = vmatpush.bf16.msra.mxu0 0
        %1814 = vmatpush.bf16.msra.mxu0 0
        %1815 = vmatpush.bf16.msra.mxu0 0
        %1816 = vmatpush.bf16.msra.mxu0 0
        %1817 = vmatpush.bf16.msra.mxu0 0
        %1818 = vmatpush.bf16.msra.mxu0 0
        %1819 = vmatpush.bf16.msra.mxu0 0
        %1820 = vmatpush.bf16.msra.mxu0 %v1808
        %1821 = vmatmul.bf16.gmra.mxu0 %v1811
        %v1822 = vpop.f32.mrf.mxu0
        %v1823 = vadd.f32 0.0, %v1822
        %v1824 = vpop.f32.mrf.mxu0
        %v1825 = vadd.f32 0.0, %v1824
        %1826 = vdwg.mxu0
        %v1829 = vunpack.c.l.b16 %v1741
        %v1830 = vunpack.c.l.b16 %v1742
        %v1831 = vpack.c.b16 %v1830, %v1829
        %v1834 = vunpack.c.l.b16 %v1521
        %v1835 = vunpack.c.l.b16 %v1522
        %v1836 = vpack.c.b16 %v1835, %v1834
        %v1839 = vsel %vm1646, %v1831, 0
        %1841 = vmatpush.bf16.msra.mxu0 0
        %1842 = vmatpush.bf16.msra.mxu0 0
        %1843 = vmatpush.bf16.msra.mxu0 0
        %1844 = vmatpush.bf16.msra.mxu0 0
        %1845 = vmatpush.bf16.msra.mxu0 0
        %1846 = vmatpush.bf16.msra.mxu0 0
        %1847 = vmatpush.bf16.msra.mxu0 0
        %1848 = vmatpush.bf16.msra.mxu0 %v1836
        %1849 = vmatmul.bf16.gmra.mxu0 %v1839
        %v1850 = vpop.f32.mrf.mxu0
        %v1851 = vadd.f32 0.0, %v1850
        %v1852 = vpop.f32.mrf.mxu0
        %v1853 = vadd.f32 0.0, %v1852
        %1854 = vdwg.mxu0
        %v1855 = vpack.c.bf16 %v1767, %v1767
        %v1856 = vpack.c.bf16 %v1769, %v1769
        %v1857 = vpack.c.bf16 %v1795, %v1795
        %v1858 = vpack.c.bf16 %v1797, %v1797
        %v1859 = vpack.c.bf16 %v1823, %v1823
        %v1860 = vpack.c.bf16 %v1825, %v1825
        %v1861 = vpack.c.bf16 %v1851, %v1851
        %v1862 = vpack.c.bf16 %v1853, %v1853
        %v1863 = vld [vmem:[%s515] sm:$0xf]
        %v1864 = vld [vmem:[%s515 + $0x4] sm:$0xf]
        %v1865 = vld [vmem:[%s515 + $0x8] sm:$0xf]
        %v1866 = vld [vmem:[%s515 + $0xc] sm:$0xf]
        %v1869 = vunpack.c.l.b16 %v1855
        %v1870 = vunpack.c.l.b16 %v1856
        %v1871 = vpack.c.b16 %v1870, %v1869
        %v1873 = vsel %vm1535, %v1871, 0
        %vm1875 = vcmask 1043456
        %v1877 = vsel %vm1875, %v1863, 0
        %1879 = vmatpush.bf16.msra.mxu0 0
        %1880 = vmatpush.bf16.msra.mxu0 0
        %1881 = vmatpush.bf16.msra.mxu0 0
        %1882 = vmatpush.bf16.msra.mxu0 0
        %1883 = vmatpush.bf16.msra.mxu0 0
        %1884 = vmatpush.bf16.msra.mxu0 0
        %1885 = vmatpush.bf16.msra.mxu0 0
        %1886 = vmatpush.bf16.msra.mxu0 %v1877
        %1887 = vmatmul.bf16.gmra.mxu0 %v1873
        %v1888 = vpop.f32.mrf.mxu0
        %v1889 = vadd.f32 0.0, %v1888
        %v1890 = vpop.f32.mrf.mxu0
        %v1891 = vadd.f32 0.0, %v1890
        %1892 = vdwg.mxu0
        %v1895 = vunpack.c.l.b16 %v1857
        %v1896 = vunpack.c.l.b16 %v1858
        %v1897 = vpack.c.b16 %v1896, %v1895
        %v1899 = vsel %vm1535, %v1897, 0
        %v1902 = vsel %vm1875, %v1864, 0
        %1904 = vmatpush.bf16.msra.mxu0 0
        %1905 = vmatpush.bf16.msra.mxu0 0
        %1906 = vmatpush.bf16.msra.mxu0 0
        %1907 = vmatpush.bf16.msra.mxu0 0
        %1908 = vmatpush.bf16.msra.mxu0 0
        %1909 = vmatpush.bf16.msra.mxu0 0
        %1910 = vmatpush.bf16.msra.mxu0 0
        %1911 = vmatpush.bf16.msra.mxu0 %v1902
        %1912 = vmatmul.bf16.gmra.mxu0 %v1899
        %v1913 = vpop.f32.mrf.mxu0
        %v1914 = vadd.f32 0.0, %v1913
        %v1915 = vpop.f32.mrf.mxu0
        %v1916 = vadd.f32 0.0, %v1915
        %1917 = vdwg.mxu0
        %v1920 = vunpack.c.l.b16 %v1859
        %v1921 = vunpack.c.l.b16 %v1860
        %v1922 = vpack.c.b16 %v1921, %v1920
        %v1924 = vsel %vm1535, %v1922, 0
        %v1927 = vsel %vm1875, %v1865, 0
        %1929 = vmatpush.bf16.msra.mxu0 0
        %1930 = vmatpush.bf16.msra.mxu0 0
        %1931 = vmatpush.bf16.msra.mxu0 0
        %1932 = vmatpush.bf16.msra.mxu0 0
        %1933 = vmatpush.bf16.msra.mxu0 0
        %1934 = vmatpush.bf16.msra.mxu0 0
        %1935 = vmatpush.bf16.msra.mxu0 0
        %1936 = vmatpush.bf16.msra.mxu0 %v1927
        %1937 = vmatmul.bf16.gmra.mxu0 %v1924
        %v1938 = vpop.f32.mrf.mxu0
        %v1939 = vadd.f32 0.0, %v1938
        %v1940 = vpop.f32.mrf.mxu0
        %v1941 = vadd.f32 0.0, %v1940
        %1942 = vdwg.mxu0
        %v1945 = vunpack.c.l.b16 %v1861
        %v1946 = vunpack.c.l.b16 %v1862
        %v1947 = vpack.c.b16 %v1946, %v1945
        %v1949 = vsel %vm1535, %v1947, 0
        %v1952 = vsel %vm1875, %v1866, 0
        %1954 = vmatpush.bf16.msra.mxu0 0
        %1955 = vmatpush.bf16.msra.mxu0 0
        %1956 = vmatpush.bf16.msra.mxu0 0
        %1957 = vmatpush.bf16.msra.mxu0 0
        %1958 = vmatpush.bf16.msra.mxu0 0
        %1959 = vmatpush.bf16.msra.mxu0 0
        %1960 = vmatpush.bf16.msra.mxu0 0
        %1961 = vmatpush.bf16.msra.mxu0 %v1952
        %1962 = vmatmul.bf16.gmra.mxu0 %v1949
        %v1963 = vpop.f32.mrf.mxu0
        %v1964 = vadd.f32 0.0, %v1963
        %v1965 = vpop.f32.mrf.mxu0
        %v1966 = vadd.f32 0.0, %v1965
        %1967 = vdwg.mxu0
        %v1968 = vadd.f32 %v1889, %v1914
        %v1969 = vadd.f32 %v1968, %v1939
        %v1970 = vadd.f32 %v1969, %v1964
        %v1971 = vadd.f32 %v1891, %v1916
        %v1972 = vadd.f32 %v1971, %v1941
        %v1973 = vadd.f32 %v1972, %v1966
        %v1974 = vadd.f32 %v1970, %v553
        %v1975 = vadd.f32 %v1973, %v554
        %v1976 = vld [vmem:[%s518] sm:$0x1]
        %v1977 = vld [vmem:[%s521] sm:$0x1]
        %1978 = vadd.xlane.f32.xlu0 %v1974
        %v1979 = vpop.xlane.xlu0 %1978
        %1980 = vadd.xlane.f32.xlu0 %v1975
        %v1981 = vpop.xlane.xlu0 %1980
        %v1982 = vmul.f32 %v1979, 0.03125
        %v1983 = vmul.f32 %v1981, 0.03125
        %v1984 = vmul.f32 %v1974, %v1974
        %v1985 = vmul.f32 %v1975, %v1975
        %1986 = vadd.xlane.f32.xlu0 %v1984
        %v1987 = vpop.xlane.xlu0 %1986
        %1988 = vadd.xlane.f32.xlu0 %v1985
        %v1989 = vpop.xlane.xlu0 %1988
        %v1990 = vmul.f32 %v1987, 0.03125
        %v1991 = vmul.f32 %v1989, 0.03125
        %v1992 = vmul.f32 %v1982, %v1982
        %v1993 = vmul.f32 %v1983, %v1983
        %v1994 = vsub.f32 %v1990, %v1992
        %v1995 = vsub.f32 %v1991, %v1993
        %v1996 = vsub.f32 %v1974, %v1982
        %v1997 = vsub.f32 %v1975, %v1983
        %v1998 = vadd.f32 %v1994, 1e-06
        %v1999 = vadd.f32 %v1995, 1e-06
        %v2000 = vrsqrt.pop %v1998
        %v2001 = vmul.f32 %v2000, %v1998
        %v2002 = vmul.f32 %v2001, %v2000
        %v2003 = vmul.f32 0.5, %v2002
        %v2004 = vsub.f32 1.5, %v2003
        %v2005 = vmul.f32 %v2000, %v2004
        %vm2006 = vweird.f32 %v1998
        %vm2007 = vweird.f32 %v2000
        %vm2008 = vmor %vm2006, %vm2007
        %v2009 = vsel %vm2008, %v2000, %v2005
        %v2010 = vrsqrt.pop %v1999
        %v2011 = vmul.f32 %v2010, %v1999
        %v2012 = vmul.f32 %v2011, %v2010
        %v2013 = vmul.f32 0.5, %v2012
        %v2014 = vsub.f32 1.5, %v2013
        %v2015 = vmul.f32 %v2010, %v2014
        %vm2016 = vweird.f32 %v1999
        %vm2017 = vweird.f32 %v2010
        %vm2018 = vmor %vm2016, %vm2017
        %v2019 = vsel %vm2018, %v2010, %v2015
        %v2020 = vmul.f32 %v1996, %v2009
        %v2021 = vmul.f32 %v1997, %v2019
        %v2023 = vperm.slane %v1976, 0
        %v2025 = vmul.f32 %v2020, %v2023
        %v2026 = vmul.f32 %v2021, %v2023
        %v2028 = vperm.slane %v1977, 0
        %v2030 = vadd.f32 %v2025, %v2028
        %v2031 = vadd.f32 %v2026, %v2028
        %v2032 = vpack.c.bf16 %v2031, %v2030
        %v2033 = vld [vmem:[%s526] sm:$0xf]
        %v2034 = vld [vmem:[%s526 + $0x4] sm:$0xf]
        %v2035 = vld [vmem:[%s526 + $0x8] sm:$0xf]
        %v2036 = vld [vmem:[%s526 + $0xc] sm:$0xf]
        %v2037 = vld [vmem:[%s526 + $0x10] sm:$0xf]
        %v2038 = vld [vmem:[%s526 + $0x14] sm:$0xf]
        %v2039 = vld [vmem:[%s526 + $0x18] sm:$0xf]
        %v2040 = vld [vmem:[%s526 + $0x1c] sm:$0xf]
        %v2041 = vld [vmem:[%s526 + $0x20] sm:$0xf]
        %v2042 = vld [vmem:[%s526 + $0x24] sm:$0xf]
        %v2043 = vld [vmem:[%s526 + $0x28] sm:$0xf]
        %v2044 = vld [vmem:[%s526 + $0x2c] sm:$0xf]
        %v2045 = vld [vmem:[%s526 + $0x30] sm:$0xf]
        %v2046 = vld [vmem:[%s526 + $0x34] sm:$0xf]
        %v2047 = vld [vmem:[%s526 + $0x38] sm:$0xf]
        %v2048 = vld [vmem:[%s526 + $0x3c] sm:$0xf]
        %v2049 = vld [vmem:[%s529] sm:$0x1]
        %v2051 = vperm.slane %v2049, 0
        %v2069 = vunpack.c.l.b16 %v2033
        %v2070 = vunpack.c.l.b16 %v2034
        %v2071 = vunpack.c.l.b16 %v2035
        %v2072 = vunpack.c.l.b16 %v2036
        %v2073 = vunpack.c.l.b16 %v2037
        %v2074 = vunpack.c.l.b16 %v2038
        %v2075 = vunpack.c.l.b16 %v2039
        %v2076 = vunpack.c.l.b16 %v2040
        %v2077 = vunpack.c.l.b16 %v2041
        %v2078 = vunpack.c.l.b16 %v2042
        %v2079 = vunpack.c.l.b16 %v2043
        %v2080 = vunpack.c.l.b16 %v2044
        %v2081 = vunpack.c.l.b16 %v2045
        %v2082 = vunpack.c.l.b16 %v2046
        %v2083 = vunpack.c.l.b16 %v2047
        %v2084 = vunpack.c.l.b16 %v2048
        %v2085 = vpack.c.b16 %v2070, %v2069
        %v2086 = vpack.c.b16 %v2072, %v2071
        %v2087 = vpack.c.b16 %v2074, %v2073
        %v2088 = vpack.c.b16 %v2076, %v2075
        %v2089 = vpack.c.b16 %v2078, %v2077
        %v2090 = vpack.c.b16 %v2080, %v2079
        %v2091 = vpack.c.b16 %v2082, %v2081
        %v2092 = vpack.c.b16 %v2084, %v2083
        %2101 = vmatpush.bf16.msra.mxu0 %v2092
        %2102 = vmatpush.bf16.msra.mxu0 %v2091
        %2103 = vmatpush.bf16.msra.mxu0 %v2090
        %2104 = vmatpush.bf16.msra.mxu0 %v2089
        %2105 = vmatpush.bf16.msra.mxu0 %v2088
        %2106 = vmatpush.bf16.msra.mxu0 %v2087
        %2107 = vmatpush.bf16.msra.mxu0 %v2086
        %2108 = vmatpush.bf16.msra.mxu0 %v2085
        %2109 = vmatmul.bf16.gmra.mxu0 %v2032
        %v2110 = vpop.f32.mrf.mxu0
        %v2111 = vadd.f32 %v2051, %v2110
        %v2112 = vpop.f32.mrf.mxu0
        %v2113 = vadd.f32 %v2051, %v2112
        %2114 = vdwg.mxu0
        %v2115 = vmax.f32 %v2111, 0.0
        %v2116 = vmax.f32 %v2113, 0.0
        %v2117 = vpack.c.bf16 %v2116, %v2115
        %v2118 = vld [vmem:[%s534] sm:$0xf]
        %v2119 = vld [vmem:[%s534 + $0x4] sm:$0xf]
        %v2120 = vld [vmem:[%s534 + $0x8] sm:$0xf]
        %v2121 = vld [vmem:[%s534 + $0xc] sm:$0xf]
        %v2122 = vld [vmem:[%s534 + $0x10] sm:$0xf]
        %v2123 = vld [vmem:[%s534 + $0x14] sm:$0xf]
        %v2124 = vld [vmem:[%s534 + $0x18] sm:$0xf]
        %v2125 = vld [vmem:[%s534 + $0x1c] sm:$0xf]
        %v2126 = vld [vmem:[%s537] sm:$0x1]
        %v2128 = vperm.slane %v2126, 0
        %v2138 = vunpack.c.l.b16 %v2118
        %v2139 = vunpack.c.l.b16 %v2119
        %v2140 = vunpack.c.l.b16 %v2120
        %v2141 = vunpack.c.l.b16 %v2121
        %v2142 = vunpack.c.l.b16 %v2122
        %v2143 = vunpack.c.l.b16 %v2123
        %v2144 = vunpack.c.l.b16 %v2124
        %v2145 = vunpack.c.l.b16 %v2125
        %v2146 = vpack.c.b16 %v2139, %v2138
        %v2147 = vpack.c.b16 %v2141, %v2140
        %v2148 = vpack.c.b16 %v2143, %v2142
        %v2149 = vpack.c.b16 %v2145, %v2144
        %vm2154 = vcmask 523264
        %v2156 = vsel %vm2154, %v2117, 0
        %2158 = vmatpush.bf16.msra.mxu0 0
        %2159 = vmatpush.bf16.msra.mxu0 0
        %2160 = vmatpush.bf16.msra.mxu0 0
        %2161 = vmatpush.bf16.msra.mxu0 0
        %2162 = vmatpush.bf16.msra.mxu0 %v2149
        %2163 = vmatpush.bf16.msra.mxu0 %v2148
        %2164 = vmatpush.bf16.msra.mxu0 %v2147
        %2165 = vmatpush.bf16.msra.mxu0 %v2146
        %2166 = vmatmul.bf16.gmra.mxu0 %v2156
        %v2167 = vpop.f32.mrf.mxu0
        %v2168 = vadd.f32 %v2128, %v2167
        %v2169 = vpop.f32.mrf.mxu0
        %v2170 = vadd.f32 %v2128, %v2169
        %2171 = vdwg.mxu0
        %v2172 = vadd.f32 %v2168, %v2030
        %v2173 = vadd.f32 %v2170, %v2031
        %v2174 = vld [vmem:[%s540] sm:$0x1]
        %v2175 = vld [vmem:[%s543] sm:$0x1]
        %2176 = vadd.xlane.f32.xlu0 %v2172
        %v2177 = vpop.xlane.xlu0 %2176
        %2178 = vadd.xlane.f32.xlu0 %v2173
        %v2179 = vpop.xlane.xlu0 %2178
        %v2180 = vmul.f32 %v2177, 0.03125
        %v2181 = vmul.f32 %v2179, 0.03125
        %v2182 = vmul.f32 %v2172, %v2172
        %v2183 = vmul.f32 %v2173, %v2173
        %2184 = vadd.xlane.f32.xlu0 %v2182
        %v2185 = vpop.xlane.xlu0 %2184
        %2186 = vadd.xlane.f32.xlu0 %v2183
        %v2187 = vpop.xlane.xlu0 %2186
        %v2188 = vmul.f32 %v2185, 0.03125
        %v2189 = vmul.f32 %v2187, 0.03125
        %v2190 = vmul.f32 %v2180, %v2180
        %v2191 = vmul.f32 %v2181, %v2181
        %v2192 = vsub.f32 %v2188, %v2190
        %v2193 = vsub.f32 %v2189, %v2191
        %v2194 = vsub.f32 %v2172, %v2180
        %v2195 = vsub.f32 %v2173, %v2181
        %v2196 = vadd.f32 %v2192, 1e-06
        %v2197 = vadd.f32 %v2193, 1e-06
        %v2198 = vrsqrt.pop %v2196
        %v2199 = vmul.f32 %v2198, %v2196
        %v2200 = vmul.f32 %v2199, %v2198
        %v2201 = vmul.f32 0.5, %v2200
        %v2202 = vsub.f32 1.5, %v2201
        %v2203 = vmul.f32 %v2198, %v2202
        %vm2204 = vweird.f32 %v2196
        %vm2205 = vweird.f32 %v2198
        %vm2206 = vmor %vm2204, %vm2205
        %v2207 = vsel %vm2206, %v2198, %v2203
        %v2208 = vrsqrt.pop %v2197
        %v2209 = vmul.f32 %v2208, %v2197
        %v2210 = vmul.f32 %v2209, %v2208
        %v2211 = vmul.f32 0.5, %v2210
        %v2212 = vsub.f32 1.5, %v2211
        %v2213 = vmul.f32 %v2208, %v2212
        %vm2214 = vweird.f32 %v2197
        %vm2215 = vweird.f32 %v2208
        %vm2216 = vmor %vm2214, %vm2215
        %v2217 = vsel %vm2216, %v2208, %v2213
        %v2218 = vmul.f32 %v2194, %v2207
        %v2219 = vmul.f32 %v2195, %v2217
        %v2221 = vperm.slane %v2174, 0
        %v2223 = vmul.f32 %v2218, %v2221
        %v2224 = vmul.f32 %v2219, %v2221
        %v2226 = vperm.slane %v2175, 0
        %v2228 = vadd.f32 %v2223, %v2226
        %v2229 = vadd.f32 %v2224, %v2226
        %2230 = vst [vmem:[#allocation2] sm:$0xff] %v2228
        %2231 = vst [vmem:[#allocation2 + $0x8] sm:$0xff] %v2229
        // Predicated region
        $region73: #{tpu_custom_call.1} parent=67 // pred_check
          %p2232 = pneg %p339
        $region74: #{tpu_custom_call.1} parent=67 // pred_check_branch
          %2234 = sbr.rel (%p2232) target = $region76
        $region75: #{tpu_custom_call.1} parent=67 // pred_region
          %2236 = vsyncadd [#allocation3], 0
          %s2237 = sshll.u32 [#allocation2], 4
          %s2238 = int_to_ptr.vmem [resolvable:$true] %s2237
          %s2239 = sshll.u32 %s12, 4
          %s2240 = int_to_ptr.hbm [resolvable:$true] %s2239
          %2245 = dma.vmem_to_hbm [thread:$0]  %s2238, 256, %s2240, [#allocation3], 128, 128, 8
        $region76: #{tpu_custom_call.1} parent=67 // pred_fallthru
          _
        // Predicated region
        $region77: #{tpu_custom_call.1} parent=67 // pred_check
          %p2246 = pneg %p339
        $region78: #{tpu_custom_call.1} parent=67 // pred_check_branch
          %2248 = sbr.rel (%p2246) target = $region80
        $region79: #{tpu_custom_call.1} parent=67 // pred_region
          %2250 = dma.done [#allocation3], 256
        $region80: #{tpu_custom_call.1} parent=67 // pred_fallthru
          _
      $region68: #{tpu_custom_call.1} parent=5 // pred_fallthru
        _
      %p2251 = scmp.le.s32.totalorder 2, %s19
      // Predicated region
      $region81: #{tpu_custom_call.1} parent=5 // pred_check
        %p2252 = pneg %p2251
      $region82: #{tpu_custom_call.1} parent=5 // pred_check_branch
        %2254 = sbr.rel (%p2252) target = $region84
      $region83: #{tpu_custom_call.1} parent=5 // pred_region
        %s2255 = ssub.s32 %s19, 2
      $region84: #{tpu_custom_call.1} parent=5 // pred_fallthru
        _
    $region6: #{tpu_custom_call.1} parent=1 // loop_footer
      %s23 = sadd.s32 1, %s19
    $region7: #{tpu_custom_call.1} parent=1 // loop_footer_branch
      %18 = sbr.rel target = $region3
    $region8: #{tpu_custom_call.1} parent=1 // loop_exit
      _
    %2256 = vsyncpa [#allocation3], 1
    %s2257 = scalar_lea.sflag [#allocation3], 1
    %2258 = vsyncpa %s2257, 1

</llo_original>
